<compile_context>
chip_gen: v7x
topology: tpu7x:2x2x1
jax: 0.10.0
libtpu: 0.0.40
codegen_flags: <defaults>
</compile_context>

<pallas_src>
import jax
import jax.numpy as jnp
from jax.experimental import pallas as pl
from jax.experimental.pallas import tpu as pltpu


def _round_up(x, m):
    return (x + m - 1) // m * m


def _pick_tile(dim, max_tile=256):
    # Tiles are used both as sublane (row) and lane (reduction) extents of the
    # dense operator blocks, so keep them multiples of 128, capped at 256.
    return min(max_tile, _round_up(dim, 128))


_COMPILER_PARAMS = pltpu.CompilerParams(
    dimension_semantics=("parallel", "arbitrary"),
    vmem_limit_bytes=48 * 1024 * 1024,
)


def _neighbor_mean_kernel(a_ref, x_ref, o_ref, acc_ref):
    """X_nbr tile = sum_k A_norm[i, k] @ X[k]."""
    @pl.when(pl.program_id(1) == 0)
    def _():
        acc_ref[...] = jnp.zeros_like(acc_ref)

    acc_ref[...] += jnp.dot(a_ref[...], x_ref[...],
                            preferred_element_type=jnp.float32)

    @pl.when(pl.program_id(1) == pl.num_programs(1) - 1)
    def _():
        o_ref[...] = acc_ref[...].astype(o_ref.dtype)


def _v2e_concat_kernel(h_ref, x_ref, xn_ref, y_ref, acc_ref):
    """Y tile = sum_k Hv2e[e, k] @ concat([X[k], X_nbr[k]], axis=-1)."""
    @pl.when(pl.program_id(1) == 0)
    def _():
        acc_ref[...] = jnp.zeros_like(acc_ref)

    xg = jnp.concatenate([x_ref[...], xn_ref[...]], axis=-1)  # lane-axis concat
    acc_ref[...] += jnp.dot(h_ref[...], xg,
                            preferred_element_type=jnp.float32)

    @pl.when(pl.program_id(1) == pl.num_programs(1) - 1)
    def _():
        y_ref[...] = acc_ref[...].astype(y_ref.dtype)


def _e2v_theta_relu_kernel(h_ref, y_ref, w_ref, b_ref, o_ref, acc_ref):
    """out tile = relu((sum_k He2v[i, k] @ Y[k]) @ W + b)."""
    @pl.when(pl.program_id(1) == 0)
    def _():
        acc_ref[...] = jnp.zeros_like(acc_ref)

    acc_ref[...] += jnp.dot(h_ref[...], y_ref[...],
                            preferred_element_type=jnp.float32)

    @pl.when(pl.program_id(1) == pl.num_programs(1) - 1)
    def _():
        x1 = jnp.dot(acc_ref[...].astype(w_ref.dtype), w_ref[...],
                     preferred_element_type=jnp.float32) + b_ref[...]
        o_ref[...] = jnp.maximum(x1, 0.0).astype(o_ref.dtype)


def graphsage_hgnnplus_forward(X, A_norm, Hv2e, He2v, W, b):
    """X:(N,C)  A_norm:(N,N)  Hv2e:(E,N)  He2v:(N,E)  W:(2C,O)=theta.weight.T  b:(O,)."""
    N, C = X.shape
    E = Hv2e.shape[0]
    O = W.shape[1]

    tn = _pick_tile(N)                 # vertex-dim tile (rows + reduction)
    te = _pick_tile(E)                 # hyperedge-dim tile (rows + reduction)
    n_pad = _round_up(N, tn)
    e_pad = _round_up(E, te)
    c_pad = _round_up(C, 128)
    o_pad = _round_up(O, 128)

    def pad2(x, r, c, dtype):
        return jnp.pad(x.astype(dtype),
                       ((0, r - x.shape[0]), (0, c - x.shape[1])))

    xp = pad2(X, n_pad, c_pad, jnp.bfloat16)
    ap = pad2(A_norm, n_pad, n_pad, jnp.bfloat16)
    hv2e = pad2(Hv2e, e_pad, n_pad, jnp.bfloat16)
    he2v = pad2(He2v, n_pad, e_pad, jnp.bfloat16)
    # theta weight: the top C rows multiply the X half of the concat, the bottom
    # C rows multiply the X_nbr half — pad each half separately so the padded
    # feature layout [X_pad | X_nbr_pad] stays aligned with the weight rows.
    w_top = pad2(W[:C, :], c_pad, o_pad, jnp.bfloat16)
    w_bot = pad2(W[C:, :], c_pad, o_pad, jnp.bfloat16)
    wp = jnp.concatenate([w_top, w_bot], axis=0)            # (2*c_pad, o_pad)
    bp = jnp.pad(b.astype(jnp.float32), (0, o_pad - O)).reshape(1, o_pad)

    # 1) X_nbr = A_norm @ X
    x_nbr = pl.pallas_call(
        _neighbor_mean_kernel,
        out_shape=jax.ShapeDtypeStruct((n_pad, c_pad), jnp.bfloat16),
        grid=(n_pad // tn, n_pad // tn),
        in_specs=[pl.BlockSpec((tn, tn), lambda i, k: (i, k)),
                  pl.BlockSpec((tn, c_pad), lambda i, k: (k, 0))],
        out_specs=pl.BlockSpec((tn, c_pad), lambda i, k: (i, 0)),
        scratch_shapes=[pltpu.VMEM((tn, c_pad), jnp.float32)],
        compiler_params=_COMPILER_PARAMS,
    )(ap, xp)

    # 2) Y = Hv2e @ [X | X_nbr]
    y = pl.pallas_call(
        _v2e_concat_kernel,
        out_shape=jax.ShapeDtypeStruct((e_pad, 2 * c_pad), jnp.bfloat16),
        grid=(e_pad // te, n_pad // tn),
        in_specs=[pl.BlockSpec((te, tn), lambda e, k: (e, k)),
                  pl.BlockSpec((tn, c_pad), lambda e, k: (k, 0)),
                  pl.BlockSpec((tn, c_pad), lambda e, k: (k, 0))],
        out_specs=pl.BlockSpec((te, 2 * c_pad), lambda e, k: (e, 0)),
        scratch_shapes=[pltpu.VMEM((te, 2 * c_pad), jnp.float32)],
        compiler_params=_COMPILER_PARAMS,
    )(hv2e, xp, x_nbr)

    # 3) out = relu((He2v @ Y) @ W + b)
    out = pl.pallas_call(
        _e2v_theta_relu_kernel,
        out_shape=jax.ShapeDtypeStruct((n_pad, o_pad), jnp.float32),
        grid=(n_pad // tn, e_pad // te),
        in_specs=[pl.BlockSpec((tn, te), lambda i, k: (i, k)),
                  pl.BlockSpec((te, 2 * c_pad), lambda i, k: (k, 0)),
                  pl.BlockSpec((2 * c_pad, o_pad), lambda i, k: (0, 0)),
                  pl.BlockSpec((1, o_pad), lambda i, k: (0, 0))],
        out_specs=pl.BlockSpec((tn, o_pad), lambda i, k: (i, 0)),
        scratch_shapes=[pltpu.VMEM((tn, 2 * c_pad), jnp.float32)],
        compiler_params=_COMPILER_PARAMS,
    )(he2v, y, wp, bp)

    return out[:N, :O]


graphsage_hgnnplus_forward_jit = jax.jit(graphsage_hgnnplus_forward)


def _reference_forward(X, A_norm, Hv2e, He2v, W, b):
    """Pure-JAX f32 reference matching the PyTorch module (eval mode)."""
    X_nbr = A_norm @ X
    X_g = jnp.concatenate([X, X_nbr], axis=1)
    Y = Hv2e @ X_g
    X_hg = He2v @ Y
    X1 = X_hg @ W + b
    return jnp.maximum(X1, 0.0)


if __name__ == "__main__":
    N, E = 32, 16            # num vertices, num hyperedges
    C, O = 32, 32            # in_channels, out_channels

    key = jax.random.PRNGKey(0)
    k_x, k_w, k_b = jax.random.split(key, 3)

    # Node features.
    X = jax.random.normal(k_x, (N, C), dtype=jnp.float32)

    # Deterministic graph: ring, each vertex has 2 neighbors -> mean weight 0.5.
    idx = jnp.arange(N)
    A = jnp.zeros((N, N), jnp.float32)
    A = A.at[idx, (idx + 1) % N].set(1.0).at[idx, (idx - 1) % N].set(1.0)
    A_norm = A / A.sum(axis=1, keepdims=True)

    # Deterministic hypergraph: hyperedge e contains 4 consecutive vertices
    # starting at 2e (mod N); every vertex belongs to exactly 2 hyperedges.
    H = jnp.zeros((N, E), jnp.float32)
    for e in range(E):
        for k in range(4):
            H = H.at[(2 * e + k) % N, e].set(1.0)
    deg_e = H.sum(axis=0)                      # (E,)
    deg_v = H.sum(axis=1)                      # (N,)
    Hv2e = (H / deg_e[None, :]).T              # (E, N): row-mean over incident vertices
    He2v = H / deg_v[:, None]                  # (N, E): row-mean over incident hyperedges

    # theta = nn.Linear(2*C, O): deterministic synthetic parameters.
    W = jax.random.normal(k_w, (2 * C, O), dtype=jnp.float32) * (1.0 / jnp.sqrt(2.0 * C))
    b = jax.random.normal(k_b, (O,), dtype=jnp.float32) * 0.01

    out = graphsage_hgnnplus_forward_jit(X, A_norm, Hv2e, He2v, W, b)
    out = jax.block_until_ready(out)

    ref = _reference_forward(X, A_norm, Hv2e, He2v, W, b)
    assert out.shape == (N, O)
    # bf16 operands with f32 accumulation -> loosened tolerance vs f32 reference.
    assert jnp.allclose(out, ref, atol=5e-2, rtol=5e-2), (
        float(jnp.max(jnp.abs(out - ref))))

    print("KERNEL_OK")
</pallas_src>

<mosaic_0001>
module attributes {stable_mosaic.version = 11 : i64} {
  func.func @_neighbor_mean_kernel(%arg0: i32, %arg1: i32, %arg2: memref<128x128xbf16, #tpu.memory_space<vmem>>, %arg3: memref<128x128xbf16, #tpu.memory_space<vmem>>, %arg4: memref<128x128xbf16, #tpu.memory_space<vmem>>, %arg5: memref<128x128xf32, #tpu.memory_space<vmem>>) attributes {dimension_semantics = [#tpu.dimension_semantics<parallel>, #tpu.dimension_semantics<arbitrary>], iteration_bounds = array<i64: 1, 1>, scalar_prefetch = 0 : i64, scratch_operands = 1 : i64, tpu.core_type = #tpu.core_type<tc>, window_params = [{transform_indices = @transform_0, window_bounds = array<i64: 128, 128>}, {transform_indices = @transform_1, window_bounds = array<i64: 128, 128>}, {transform_indices = @transform_2, window_bounds = array<i64: 128, 128>}]} {
    %c0_i32 = arith.constant 0 : i32
    %0 = arith.cmpi eq, %arg1, %c0_i32 : i32
    %1 = arith.extui %0 : i1 to i32
    %c0_i32_0 = arith.constant 0 : i32
    %2 = arith.cmpi ne, %1, %c0_i32_0 : i32
    scf.if %2 {
      %cst_10 = arith.constant 0.000000e+00 : f32
      %12 = vector.broadcast %cst_10 : f32 to vector<128x128xf32>
      %c0_11 = arith.constant 0 : index
      %c0_12 = arith.constant 0 : index
      %13 = vector.load %arg5[%c0_11, %c0_12] : memref<128x128xf32, #tpu.memory_space<vmem>>, vector<128x128xf32>
      tpu.vector_store %arg5[%c0_11, %c0_12], %12 {strides = array<i32>} : memref<128x128xf32, #tpu.memory_space<vmem>>, vector<128x128xf32>,
    } else {
    }
    %c0 = arith.constant 0 : index
    %c0_1 = arith.constant 0 : index
    %3 = vector.load %arg5[%c0, %c0_1] : memref<128x128xf32, #tpu.memory_space<vmem>>, vector<128x128xf32>
    %c0_2 = arith.constant 0 : index
    %c0_3 = arith.constant 0 : index
    %4 = vector.load %arg2[%c0_2, %c0_3] : memref<128x128xbf16, #tpu.memory_space<vmem>>, vector<128x128xbf16>
    %c0_4 = arith.constant 0 : index
    %c0_5 = arith.constant 0 : index
    %5 = vector.load %arg3[%c0_4, %c0_5] : memref<128x128xbf16, #tpu.memory_space<vmem>>, vector<128x128xbf16>
    %cst = arith.constant dense<0.000000e+00> : vector<128x128xf32>
    %6 = tpu.matmul %4, %5, %cst {dimension_numbers = #tpu.dot_dimension_numbers<[1], [0], [0], [1], [0, 0, 1, 1], [], []>} : vector<128x128xbf16>, vector<128x128xbf16>, vector<128x128xf32> -> vector<128x128xf32>
    %7 = arith.addf %3, %6 : vector<128x128xf32>
    %c0_6 = arith.constant 0 : index
    %c0_7 = arith.constant 0 : index
    %8 = vector.load %arg5[%c0_6, %c0_7] : memref<128x128xf32, #tpu.memory_space<vmem>>, vector<128x128xf32>
    tpu.vector_store %arg5[%c0_6, %c0_7], %7 {strides = array<i32>} : memref<128x128xf32, #tpu.memory_space<vmem>>, vector<128x128xf32>,
    %c0_i32_8 = arith.constant 0 : i32
    %9 = arith.cmpi eq, %arg1, %c0_i32_8 : i32
    %10 = arith.extui %9 : i1 to i32
    %c0_i32_9 = arith.constant 0 : i32
    %11 = arith.cmpi ne, %10, %c0_i32_9 : i32
    scf.if %11 {
      %c0_10 = arith.constant 0 : index
      %c0_11 = arith.constant 0 : index
      %12 = vector.load %arg5[%c0_10, %c0_11] : memref<128x128xf32, #tpu.memory_space<vmem>>, vector<128x128xf32>
      %13 = arith.truncf %12 : vector<128x128xf32> to vector<128x128xbf16>
      %c0_12 = arith.constant 0 : index
      %c0_13 = arith.constant 0 : index
      %14 = vector.load %arg4[%c0_12, %c0_13] : memref<128x128xbf16, #tpu.memory_space<vmem>>, vector<128x128xbf16>
      tpu.vector_store %arg4[%c0_12, %c0_13], %13 {strides = array<i32>} : memref<128x128xbf16, #tpu.memory_space<vmem>>, vector<128x128xbf16>,
    } else {
    }
    return
  }
  func.func @transform_0(%arg0: i32, %arg1: i32) -> (i32, i32) {
    %c0_i32 = arith.constant 0 : i32
    return %arg0, %arg1 : i32, i32
  }
  func.func @transform_1(%arg0: i32, %arg1: i32) -> (i32, i32) {
    %c0_i32 = arith.constant 0 : i32
    %c0_i32_0 = arith.constant 0 : i32
    return %arg1, %c0_i32 : i32, i32
  }
  func.func @transform_2(%arg0: i32, %arg1: i32) -> (i32, i32) {
    %c0_i32 = arith.constant 0 : i32
    %c0_i32_0 = arith.constant 0 : i32
    return %arg0, %c0_i32 : i32, i32
  }
}

module attributes {stable_mosaic.version = 11 : i64} {
  func.func @_e2v_theta_relu_kernel(%arg0: i32, %arg1: i32, %arg2: memref<128x128xbf16, #tpu.memory_space<vmem>>, %arg3: memref<128x256xbf16, #tpu.memory_space<vmem>>, %arg4: memref<256x128xbf16, #tpu.memory_space<vmem>>, %arg5: memref<1x128xf32, #tpu.memory_space<vmem>>, %arg6: memref<128x128xf32, #tpu.memory_space<vmem>>, %arg7: memref<128x256xf32, #tpu.memory_space<vmem>>) attributes {dimension_semantics = [#tpu.dimension_semantics<parallel>, #tpu.dimension_semantics<arbitrary>], iteration_bounds = array<i64: 1, 1>, scalar_prefetch = 0 : i64, scratch_operands = 1 : i64, tpu.core_type = #tpu.core_type<tc>, window_params = [{transform_indices = @transform_0, window_bounds = array<i64: 128, 128>}, {transform_indices = @transform_1, window_bounds = array<i64: 128, 256>}, {pipeline_mode = #tpu.pipeline_mode<synchronous>, transform_indices = @transform_2, window_bounds = array<i64: 256, 128>}, {pipeline_mode = #tpu.pipeline_mode<synchronous>, transform_indices = @transform_3, window_bounds = array<i64: 1, 128>}, {transform_indices = @transform_4, window_bounds = array<i64: 128, 128>}]} {
    %c0_i32 = arith.constant 0 : i32
    %0 = arith.cmpi eq, %arg1, %c0_i32 : i32
    %1 = arith.extui %0 : i1 to i32
    %c0_i32_0 = arith.constant 0 : i32
    %2 = arith.cmpi ne, %1, %c0_i32_0 : i32
    scf.if %2 {
      %cst_10 = arith.constant 0.000000e+00 : f32
      %12 = vector.broadcast %cst_10 : f32 to vector<128x256xf32>
      %c0_11 = arith.constant 0 : index
      %c0_12 = arith.constant 0 : index
      %13 = vector.load %arg7[%c0_11, %c0_12] : memref<128x256xf32, #tpu.memory_space<vmem>>, vector<128x256xf32>
      tpu.vector_store %arg7[%c0_11, %c0_12], %12 {strides = array<i32>} : memref<128x256xf32, #tpu.memory_space<vmem>>, vector<128x256xf32>,
    } else {
    }
    %c0 = arith.constant 0 : index
    %c0_1 = arith.constant 0 : index
    %3 = vector.load %arg7[%c0, %c0_1] : memref<128x256xf32, #tpu.memory_space<vmem>>, vector<128x256xf32>
    %c0_2 = arith.constant 0 : index
    %c0_3 = arith.constant 0 : index
    %4 = vector.load %arg2[%c0_2, %c0_3] : memref<128x128xbf16, #tpu.memory_space<vmem>>, vector<128x128xbf16>
    %c0_4 = arith.constant 0 : index
    %c0_5 = arith.constant 0 : index
    %5 = vector.load %arg3[%c0_4, %c0_5] : memref<128x256xbf16, #tpu.memory_space<vmem>>, vector<128x256xbf16>
    %cst = arith.constant dense<0.000000e+00> : vector<128x256xf32>
    %6 = tpu.matmul %4, %5, %cst {dimension_numbers = #tpu.dot_dimension_numbers<[1], [0], [0], [1], [0, 0, 1, 1], [], []>} : vector<128x128xbf16>, vector<128x256xbf16>, vector<128x256xf32> -> vector<128x256xf32>
    %7 = arith.addf %3, %6 : vector<128x256xf32>
    %c0_6 = arith.constant 0 : index
    %c0_7 = arith.constant 0 : index
    %8 = vector.load %arg7[%c0_6, %c0_7] : memref<128x256xf32, #tpu.memory_space<vmem>>, vector<128x256xf32>
    tpu.vector_store %arg7[%c0_6, %c0_7], %7 {strides = array<i32>} : memref<128x256xf32, #tpu.memory_space<vmem>>, vector<128x256xf32>,
    %c0_i32_8 = arith.constant 0 : i32
    %9 = arith.cmpi eq, %arg1, %c0_i32_8 : i32
    %10 = arith.extui %9 : i1 to i32
    %c0_i32_9 = arith.constant 0 : i32
    %11 = arith.cmpi ne, %10, %c0_i32_9 : i32
    scf.if %11 {
      %c0_10 = arith.constant 0 : index
      %c0_11 = arith.constant 0 : index
      %12 = vector.load %arg7[%c0_10, %c0_11] : memref<128x256xf32, #tpu.memory_space<vmem>>, vector<128x256xf32>
      %13 = arith.truncf %12 : vector<128x256xf32> to vector<128x256xbf16>
      %c0_12 = arith.constant 0 : index
      %c0_13 = arith.constant 0 : index
      %14 = vector.load %arg4[%c0_12, %c0_13] : memref<256x128xbf16, #tpu.memory_space<vmem>>, vector<256x128xbf16>
      %cst_14 = arith.constant dense<0.000000e+00> : vector<128x128xf32>
      %15 = tpu.matmul %13, %14, %cst_14 {dimension_numbers = #tpu.dot_dimension_numbers<[1], [0], [0], [1], [0, 0, 1, 1], [], []>} : vector<128x256xbf16>, vector<256x128xbf16>, vector<128x128xf32> -> vector<128x128xf32>
      %c0_15 = arith.constant 0 : index
      %c0_16 = arith.constant 0 : index
      %16 = vector.load %arg5[%c0_15, %c0_16] : memref<1x128xf32, #tpu.memory_space<vmem>>, vector<1x128xf32>
      %17 = vector.broadcast %16 : vector<1x128xf32> to vector<128x128xf32>
      %18 = arith.addf %15, %17 : vector<128x128xf32>
      %cst_17 = arith.constant 0.000000e+00 : f32
      %19 = vector.broadcast %cst_17 : f32 to vector<128x128xf32>
      %20 = arith.maximumf %18, %19 : vector<128x128xf32>
      %c0_18 = arith.constant 0 : index
      %c0_19 = arith.constant 0 : index
      %21 = vector.load %arg6[%c0_18, %c0_19] : memref<128x128xf32, #tpu.memory_space<vmem>>, vector<128x128xf32>
      tpu.vector_store %arg6[%c0_18, %c0_19], %20 {strides = array<i32>} : memref<128x128xf32, #tpu.memory_space<vmem>>, vector<128x128xf32>,
    } else {
    }
    return
  }
  func.func @transform_0(%arg0: i32, %arg1: i32) -> (i32, i32) {
    %c0_i32 = arith.constant 0 : i32
    return %arg0, %arg1 : i32, i32
  }
  func.func @transform_1(%arg0: i32, %arg1: i32) -> (i32, i32) {
    %c0_i32 = arith.constant 0 : i32
    %c0_i32_0 = arith.constant 0 : i32
    return %arg1, %c0_i32 : i32, i32
  }
  func.func @transform_2(%arg0: i32, %arg1: i32) -> (i32, i32) {
    %c0_i32 = arith.constant 0 : i32
    %c0_i32_0 = arith.constant 0 : i32
    %c0_i32_1 = arith.constant 0 : i32
    return %c0_i32, %c0_i32_0 : i32, i32
  }
  func.func @transform_3(%arg0: i32, %arg1: i32) -> (i32, i32) {
    %c0_i32 = arith.constant 0 : i32
    %c0_i32_0 = arith.constant 0 : i32
    %c0_i32_1 = arith.constant 0 : i32
    return %c0_i32, %c0_i32_0 : i32, i32
  }
  func.func @transform_4(%arg0: i32, %arg1: i32) -> (i32, i32) {
    %c0_i32 = arith.constant 0 : i32
    %c0_i32_0 = arith.constant 0 : i32
    return %arg0, %c0_i32 : i32, i32
  }
}

module attributes {stable_mosaic.version = 11 : i64} {
  func.func @_v2e_concat_kernel(%arg0: i32, %arg1: i32, %arg2: memref<128x128xbf16, #tpu.memory_space<vmem>>, %arg3: memref<128x128xbf16, #tpu.memory_space<vmem>>, %arg4: memref<128x128xbf16, #tpu.memory_space<vmem>>, %arg5: memref<128x256xbf16, #tpu.memory_space<vmem>>, %arg6: memref<128x256xf32, #tpu.memory_space<vmem>>) attributes {dimension_semantics = [#tpu.dimension_semantics<parallel>, #tpu.dimension_semantics<arbitrary>], iteration_bounds = array<i64: 1, 1>, scalar_prefetch = 0 : i64, scratch_operands = 1 : i64, tpu.core_type = #tpu.core_type<tc>, window_params = [{transform_indices = @transform_0, window_bounds = array<i64: 128, 128>}, {transform_indices = @transform_1, window_bounds = array<i64: 128, 128>}, {transform_indices = @transform_2, window_bounds = array<i64: 128, 128>}, {transform_indices = @transform_3, window_bounds = array<i64: 128, 256>}]} {
    %c0_i32 = arith.constant 0 : i32
    %0 = arith.cmpi eq, %arg1, %c0_i32 : i32
    %1 = arith.extui %0 : i1 to i32
    %c0_i32_0 = arith.constant 0 : i32
    %2 = arith.cmpi ne, %1, %c0_i32_0 : i32
    scf.if %2 {
      %cst_12 = arith.constant 0.000000e+00 : f32
      %14 = vector.broadcast %cst_12 : f32 to vector<128x256xf32>
      %c0_13 = arith.constant 0 : index
      %c0_14 = arith.constant 0 : index
      %15 = vector.load %arg6[%c0_13, %c0_14] : memref<128x256xf32, #tpu.memory_space<vmem>>, vector<128x256xf32>
      tpu.vector_store %arg6[%c0_13, %c0_14], %14 {strides = array<i32>} : memref<128x256xf32, #tpu.memory_space<vmem>>, vector<128x256xf32>,
    } else {
    }
    %c0 = arith.constant 0 : index
    %c0_1 = arith.constant 0 : index
    %3 = vector.load %arg3[%c0, %c0_1] : memref<128x128xbf16, #tpu.memory_space<vmem>>, vector<128x128xbf16>
    %c0_2 = arith.constant 0 : index
    %c0_3 = arith.constant 0 : index
    %4 = vector.load %arg4[%c0_2, %c0_3] : memref<128x128xbf16, #tpu.memory_space<vmem>>, vector<128x128xbf16>
    %5 = tpu.concatenate %3, %4 in 1 : vector<128x128xbf16>, vector<128x128xbf16> -> vector<128x256xbf16>
    %c0_4 = arith.constant 0 : index
    %c0_5 = arith.constant 0 : index
    %6 = vector.load %arg6[%c0_4, %c0_5] : memref<128x256xf32, #tpu.memory_space<vmem>>, vector<128x256xf32>
    %c0_6 = arith.constant 0 : index
    %c0_7 = arith.constant 0 : index
    %7 = vector.load %arg2[%c0_6, %c0_7] : memref<128x128xbf16, #tpu.memory_space<vmem>>, vector<128x128xbf16>
    %cst = arith.constant dense<0.000000e+00> : vector<128x256xf32>
    %8 = tpu.matmul %7, %5, %cst {dimension_numbers = #tpu.dot_dimension_numbers<[1], [0], [0], [1], [0, 0, 1, 1], [], []>} : vector<128x128xbf16>, vector<128x256xbf16>, vector<128x256xf32> -> vector<128x256xf32>
    %9 = arith.addf %6, %8 : vector<128x256xf32>
    %c0_8 = arith.constant 0 : index
    %c0_9 = arith.constant 0 : index
    %10 = vector.load %arg6[%c0_8, %c0_9] : memref<128x256xf32, #tpu.memory_space<vmem>>, vector<128x256xf32>
    tpu.vector_store %arg6[%c0_8, %c0_9], %9 {strides = array<i32>} : memref<128x256xf32, #tpu.memory_space<vmem>>, vector<128x256xf32>,
    %c0_i32_10 = arith.constant 0 : i32
    %11 = arith.cmpi eq, %arg1, %c0_i32_10 : i32
    %12 = arith.extui %11 : i1 to i32
    %c0_i32_11 = arith.constant 0 : i32
    %13 = arith.cmpi ne, %12, %c0_i32_11 : i32
    scf.if %13 {
      %c0_12 = arith.constant 0 : index
      %c0_13 = arith.constant 0 : index
      %14 = vector.load %arg6[%c0_12, %c0_13] : memref<128x256xf32, #tpu.memory_space<vmem>>, vector<128x256xf32>
      %15 = arith.truncf %14 : vector<128x256xf32> to vector<128x256xbf16>
      %c0_14 = arith.constant 0 : index
      %c0_15 = arith.constant 0 : index
      %16 = vector.load %arg5[%c0_14, %c0_15] : memref<128x256xbf16, #tpu.memory_space<vmem>>, vector<128x256xbf16>
      tpu.vector_store %arg5[%c0_14, %c0_15], %15 {strides = array<i32>} : memref<128x256xbf16, #tpu.memory_space<vmem>>, vector<128x256xbf16>,
    } else {
    }
    return
  }
  func.func @transform_0(%arg0: i32, %arg1: i32) -> (i32, i32) {
    %c0_i32 = arith.constant 0 : i32
    return %arg0, %arg1 : i32, i32
  }
  func.func @transform_1(%arg0: i32, %arg1: i32) -> (i32, i32) {
    %c0_i32 = arith.constant 0 : i32
    %c0_i32_0 = arith.constant 0 : i32
    return %arg1, %c0_i32 : i32, i32
  }
  func.func @transform_2(%arg0: i32, %arg1: i32) -> (i32, i32) {
    %c0_i32 = arith.constant 0 : i32
    %c0_i32_0 = arith.constant 0 : i32
    return %arg1, %c0_i32 : i32, i32
  }
  func.func @transform_3(%arg0: i32, %arg1: i32) -> (i32, i32) {
    %c0_i32 = arith.constant 0 : i32
    %c0_i32_0 = arith.constant 0 : i32
    return %arg0, %c0_i32 : i32, i32
  }
}

</mosaic_0001>

<llo_original>
// kernel: graphsage_hgnnplus_forward.3
$region0: #{graphsage_hgnnplus_forward.3}
  #allocation0 [shape = 'u32[]', space=smem, size = 0x4, offset = 0x4, fixed_abs, tag = 'smem constant byte address 0x4 - core index']
  #allocation1 [shape = 'u32[144,128]{1,0:T(1,128)}', space=vmem, size = 0x12000, scoped, tag = 'internal scratch']
  #allocation2 [shape = 'f32[128,128]{1,0:T(8,128)}', space=vmem, size = 0x10000, scoped, tag = 'scratch operand']
  %s0 = inlined_call_operand.vmem [shape: bf16[128,128], index: 0, kind: input, shape index: {}]
  %s1 = inlined_call_operand.vmem [shape: bf16[128,128], index: 1, kind: input, shape index: {}]
  %s2 = inlined_call_operand.vmem [shape: bf16[128,128], index: 2, kind: output, shape index: {}]
  %s3 = sld [smem:[#allocation0]]
  $region26: #{graphsage_hgnnplus_forward.3} parent=0
    _
  %s5 = ssub.s32 1, %s3
  %s6 = scalar_select 0, %s5, %s3
  // Predicated region
  $region2: #{graphsage_hgnnplus_forward.3} parent=0 // pred_check
    _
  $region3: #{graphsage_hgnnplus_forward.3} parent=0 // pred_check_branch
    %8 = sbr.rel (0) target = $region5
  $region4: #{graphsage_hgnnplus_forward.3} parent=0 // pred_region
    _
  $region5: #{graphsage_hgnnplus_forward.3} parent=0 // pred_fallthru
    _
  // Predicated region
  $region6: #{graphsage_hgnnplus_forward.3} parent=0 // pred_check
    _
  $region7: #{graphsage_hgnnplus_forward.3} parent=0 // pred_check_branch
    %10 = sbr.rel (0) target = $region9
  $region8: #{graphsage_hgnnplus_forward.3} parent=0 // pred_region
    _
  $region9: #{graphsage_hgnnplus_forward.3} parent=0 // pred_fallthru
    _
  %p12 = scmp.eq.s32.totalorder 0, 0
  // Predicated region
  $region10: #{graphsage_hgnnplus_forward.3} parent=0 // pred_check
    %p13 = pneg %p12
  $region11: #{graphsage_hgnnplus_forward.3} parent=0 // pred_check_branch
    %15 = sbr.rel (%p13) target = $region13
  $region12: #{graphsage_hgnnplus_forward.3} parent=0 // pred_region
    %16 = vst [vmem:[#allocation2] sm:$0xff] 0.0
    %17 = vst [vmem:[#allocation2 + $0x8] sm:$0xff] 0.0
    %18 = vst [vmem:[#allocation2 + $0x10] sm:$0xff] 0.0
    %19 = vst [vmem:[#allocation2 + $0x18] sm:$0xff] 0.0
    %20 = vst [vmem:[#allocation2 + $0x20] sm:$0xff] 0.0
    %21 = vst [vmem:[#allocation2 + $0x28] sm:$0xff] 0.0
    %22 = vst [vmem:[#allocation2 + $0x30] sm:$0xff] 0.0
    %23 = vst [vmem:[#allocation2 + $0x38] sm:$0xff] 0.0
    %24 = vst [vmem:[#allocation2 + $0x40] sm:$0xff] 0.0
    %25 = vst [vmem:[#allocation2 + $0x48] sm:$0xff] 0.0
    %26 = vst [vmem:[#allocation2 + $0x50] sm:$0xff] 0.0
    %27 = vst [vmem:[#allocation2 + $0x58] sm:$0xff] 0.0
    %28 = vst [vmem:[#allocation2 + $0x60] sm:$0xff] 0.0
    %29 = vst [vmem:[#allocation2 + $0x68] sm:$0xff] 0.0
    %30 = vst [vmem:[#allocation2 + $0x70] sm:$0xff] 0.0
    %31 = vst [vmem:[#allocation2 + $0x78] sm:$0xff] 0.0
  $region13: #{graphsage_hgnnplus_forward.3} parent=0 // pred_fallthru
    _
  %v32 = vld [vmem:[#allocation2] sm:$0xff]
  %v33 = vld [vmem:[#allocation2 + $0x8] sm:$0xff]
  %v34 = vld [vmem:[#allocation2 + $0x10] sm:$0xff]
  %v35 = vld [vmem:[#allocation2 + $0x18] sm:$0xff]
  %v36 = vld [vmem:[#allocation2 + $0x20] sm:$0xff]
  %v37 = vld [vmem:[#allocation2 + $0x28] sm:$0xff]
  %v38 = vld [vmem:[#allocation2 + $0x30] sm:$0xff]
  %v39 = vld [vmem:[#allocation2 + $0x38] sm:$0xff]
  %v40 = vld [vmem:[#allocation2 + $0x40] sm:$0xff]
  %v41 = vld [vmem:[#allocation2 + $0x48] sm:$0xff]
  %v42 = vld [vmem:[#allocation2 + $0x50] sm:$0xff]
  %v43 = vld [vmem:[#allocation2 + $0x58] sm:$0xff]
  %v44 = vld [vmem:[#allocation2 + $0x60] sm:$0xff]
  %v45 = vld [vmem:[#allocation2 + $0x68] sm:$0xff]
  %v46 = vld [vmem:[#allocation2 + $0x70] sm:$0xff]
  %v47 = vld [vmem:[#allocation2 + $0x78] sm:$0xff]
  %v48 = vld [vmem:[%s0] sm:$0xf]
  %v49 = vld [vmem:[%s0 + $0x4] sm:$0xf]
  %v50 = vld [vmem:[%s0 + $0x8] sm:$0xf]
  %v51 = vld [vmem:[%s0 + $0xc] sm:$0xf]
  %v52 = vld [vmem:[%s0 + $0x10] sm:$0xf]
  %v53 = vld [vmem:[%s0 + $0x14] sm:$0xf]
  %v54 = vld [vmem:[%s0 + $0x18] sm:$0xf]
  %v55 = vld [vmem:[%s0 + $0x1c] sm:$0xf]
  %v56 = vld [vmem:[%s0 + $0x20] sm:$0xf]
  %v57 = vld [vmem:[%s0 + $0x24] sm:$0xf]
  %v58 = vld [vmem:[%s0 + $0x28] sm:$0xf]
  %v59 = vld [vmem:[%s0 + $0x2c] sm:$0xf]
  %v60 = vld [vmem:[%s0 + $0x30] sm:$0xf]
  %v61 = vld [vmem:[%s0 + $0x34] sm:$0xf]
  %v62 = vld [vmem:[%s0 + $0x38] sm:$0xf]
  %v63 = vld [vmem:[%s0 + $0x3c] sm:$0xf]
  %v64 = vld [vmem:[%s1] sm:$0xf]
  %v65 = vld [vmem:[%s1 + $0x4] sm:$0xf]
  %v66 = vld [vmem:[%s1 + $0x8] sm:$0xf]
  %v67 = vld [vmem:[%s1 + $0xc] sm:$0xf]
  %v68 = vld [vmem:[%s1 + $0x10] sm:$0xf]
  %v69 = vld [vmem:[%s1 + $0x14] sm:$0xf]
  %v70 = vld [vmem:[%s1 + $0x18] sm:$0xf]
  %v71 = vld [vmem:[%s1 + $0x1c] sm:$0xf]
  %v72 = vld [vmem:[%s1 + $0x20] sm:$0xf]
  %v73 = vld [vmem:[%s1 + $0x24] sm:$0xf]
  %v74 = vld [vmem:[%s1 + $0x28] sm:$0xf]
  %v75 = vld [vmem:[%s1 + $0x2c] sm:$0xf]
  %v76 = vld [vmem:[%s1 + $0x30] sm:$0xf]
  %v77 = vld [vmem:[%s1 + $0x34] sm:$0xf]
  %v78 = vld [vmem:[%s1 + $0x38] sm:$0xf]
  %v79 = vld [vmem:[%s1 + $0x3c] sm:$0xf]
  %v96 = vunpack.c.l.b16 %v48
  %v97 = vunpack.c.l.b16 %v49
  %v98 = vunpack.c.l.b16 %v50
  %v99 = vunpack.c.l.b16 %v51
  %v100 = vunpack.c.l.b16 %v52
  %v101 = vunpack.c.l.b16 %v53
  %v102 = vunpack.c.l.b16 %v54
  %v103 = vunpack.c.l.b16 %v55
  %v104 = vunpack.c.l.b16 %v56
  %v105 = vunpack.c.l.b16 %v57
  %v106 = vunpack.c.l.b16 %v58
  %v107 = vunpack.c.l.b16 %v59
  %v108 = vunpack.c.l.b16 %v60
  %v109 = vunpack.c.l.b16 %v61
  %v110 = vunpack.c.l.b16 %v62
  %v111 = vunpack.c.l.b16 %v63
  %v112 = vpack.c.b16 %v97, %v96
  %v113 = vpack.c.b16 %v99, %v98
  %v114 = vpack.c.b16 %v101, %v100
  %v115 = vpack.c.b16 %v103, %v102
  %v116 = vpack.c.b16 %v105, %v104
  %v117 = vpack.c.b16 %v107, %v106
  %v118 = vpack.c.b16 %v109, %v108
  %v119 = vpack.c.b16 %v111, %v110
  %v144 = vunpack.c.l.b16 %v64
  %v145 = vunpack.c.l.b16 %v65
  %v146 = vunpack.c.l.b16 %v66
  %v147 = vunpack.c.l.b16 %v67
  %v148 = vunpack.c.l.b16 %v68
  %v149 = vunpack.c.l.b16 %v69
  %v150 = vunpack.c.l.b16 %v70
  %v151 = vunpack.c.l.b16 %v71
  %v152 = vunpack.c.l.b16 %v72
  %v153 = vunpack.c.l.b16 %v73
  %v154 = vunpack.c.l.b16 %v74
  %v155 = vunpack.c.l.b16 %v75
  %v156 = vunpack.c.l.b16 %v76
  %v157 = vunpack.c.l.b16 %v77
  %v158 = vunpack.c.l.b16 %v78
  %v159 = vunpack.c.l.b16 %v79
  %v160 = vpack.c.b16 %v145, %v144
  %v161 = vpack.c.b16 %v147, %v146
  %v162 = vpack.c.b16 %v149, %v148
  %v163 = vpack.c.b16 %v151, %v150
  %v164 = vpack.c.b16 %v153, %v152
  %v165 = vpack.c.b16 %v155, %v154
  %v166 = vpack.c.b16 %v157, %v156
  %v167 = vpack.c.b16 %v159, %v158
  %176 = vmatprep.subr.bf16.mxu0 0
  %177 = vmatpush1.bf16.msra.mxu0 %v160
  %178 = vmatprep.subr.bf16.mxu0 0
  %179 = vmatpush1.bf16.msra.mxu0 %v161
  %180 = vmatprep.subr.bf16.mxu0 0
  %181 = vmatpush1.bf16.msra.mxu0 %v162
  %182 = vmatprep.subr.bf16.mxu0 0
  %183 = vmatpush1.bf16.msra.mxu0 %v163
  %184 = vmatprep.subr.bf16.mxu0 0
  %185 = vmatpush1.bf16.msra.mxu0 %v164
  %186 = vmatprep.subr.bf16.mxu0 0
  %187 = vmatpush1.bf16.msra.mxu0 %v165
  %188 = vmatprep.subr.bf16.mxu0 0
  %189 = vmatpush1.bf16.msra.mxu0 %v166
  %190 = vmatprep.subr.bf16.mxu0 0
  %191 = vmatpush1.bf16.msra.mxu0 %v167
  %192 = vmatprep.subr.bf16.mxu0 0
  %193 = vmatpush1.bf16.msra.mxu0 0
  %194 = vmatprep.subr.bf16.mxu0 0
  %195 = vmatpush1.bf16.msra.mxu0 0
  %196 = vmatprep.subr.bf16.mxu0 0
  %197 = vmatpush1.bf16.msra.mxu0 0
  %198 = vmatprep.subr.bf16.mxu0 0
  %199 = vmatpush1.bf16.msra.mxu0 0
  %200 = vmatprep.subr.bf16.mxu0 0
  %201 = vmatpush1.bf16.msra.mxu0 0
  %202 = vmatprep.subr.bf16.mxu0 0
  %203 = vmatpush1.bf16.msra.mxu0 0
  %204 = vmatprep.subr.bf16.mxu0 0
  %205 = vmatpush1.bf16.msra.mxu0 0
  %206 = vmatprep.subr.bf16.mxu0 0
  %207 = vmatpush1.bf16.msra.mxu0 0
  %208 = vmatprep.mubr.bf16.mxu0 0
  %209 = vmatmul.mubr.bf16.gmra.mrb[0].mxu0 %v112
  %v210 = vpop.f32.mrb[0].mxu0
  %v211 = vadd.f32 0.0, %v210
  %v212 = vpop.f32.mrb[0].mxu0
  %v213 = vpop.f32.mrb[0].mxu0
  %v214 = vadd.f32 0.0, %v213
  %v215 = vpop.f32.mrb[0].mxu0
  %216 = vmatprep.mubr.bf16.mxu0 0
  %217 = vmatmul.mubr.bf16.gmra.mrb[0].mxu0 %v113
  %v218 = vpop.f32.mrb[0].mxu0
  %v219 = vadd.f32 0.0, %v218
  %v220 = vpop.f32.mrb[0].mxu0
  %v221 = vpop.f32.mrb[0].mxu0
  %v222 = vadd.f32 0.0, %v221
  %v223 = vpop.f32.mrb[0].mxu0
  %224 = vmatprep.mubr.bf16.mxu0 0
  %225 = vmatmul.mubr.bf16.gmra.mrb[0].mxu0 %v114
  %v226 = vpop.f32.mrb[0].mxu0
  %v227 = vadd.f32 0.0, %v226
  %v228 = vpop.f32.mrb[0].mxu0
  %v229 = vpop.f32.mrb[0].mxu0
  %v230 = vadd.f32 0.0, %v229
  %v231 = vpop.f32.mrb[0].mxu0
  %232 = vmatprep.mubr.bf16.mxu0 0
  %233 = vmatmul.mubr.bf16.gmra.mrb[0].mxu0 %v115
  %v234 = vpop.f32.mrb[0].mxu0
  %v235 = vadd.f32 0.0, %v234
  %v236 = vpop.f32.mrb[0].mxu0
  %v237 = vpop.f32.mrb[0].mxu0
  %v238 = vadd.f32 0.0, %v237
  %v239 = vpop.f32.mrb[0].mxu0
  %240 = vmatprep.mubr.bf16.mxu0 0
  %241 = vmatmul.mubr.bf16.gmra.mrb[0].mxu0 %v116
  %v242 = vpop.f32.mrb[0].mxu0
  %v243 = vadd.f32 0.0, %v242
  %v244 = vpop.f32.mrb[0].mxu0
  %v245 = vpop.f32.mrb[0].mxu0
  %v246 = vadd.f32 0.0, %v245
  %v247 = vpop.f32.mrb[0].mxu0
  %248 = vmatprep.mubr.bf16.mxu0 0
  %249 = vmatmul.mubr.bf16.gmra.mrb[0].mxu0 %v117
  %v250 = vpop.f32.mrb[0].mxu0
  %v251 = vadd.f32 0.0, %v250
  %v252 = vpop.f32.mrb[0].mxu0
  %v253 = vpop.f32.mrb[0].mxu0
  %v254 = vadd.f32 0.0, %v253
  %v255 = vpop.f32.mrb[0].mxu0
  %256 = vmatprep.mubr.bf16.mxu0 0
  %257 = vmatmul.mubr.bf16.gmra.mrb[0].mxu0 %v118
  %v258 = vpop.f32.mrb[0].mxu0
  %v259 = vadd.f32 0.0, %v258
  %v260 = vpop.f32.mrb[0].mxu0
  %v261 = vpop.f32.mrb[0].mxu0
  %v262 = vadd.f32 0.0, %v261
  %v263 = vpop.f32.mrb[0].mxu0
  %264 = vmatprep.mubr.bf16.mxu0 0
  %265 = vmatmul.mubr.bf16.gmra.mrb[0].mxu0 %v119
  %v266 = vpop.f32.mrb[0].mxu0
  %v267 = vadd.f32 0.0, %v266
  %v268 = vpop.f32.mrb[0].mxu0
  %v269 = vpop.f32.mrb[0].mxu0
  %v270 = vadd.f32 0.0, %v269
  %v271 = vpop.f32.mrb[0].mxu0
  %272 = vdwg.mxu0
  %v273 = vadd.f32 %v32, %v211
  %v274 = vadd.f32 %v33, %v214
  %v275 = vadd.f32 %v34, %v219
  %v276 = vadd.f32 %v35, %v222
  %v277 = vadd.f32 %v36, %v227
  %v278 = vadd.f32 %v37, %v230
  %v279 = vadd.f32 %v38, %v235
  %v280 = vadd.f32 %v39, %v238
  %v281 = vadd.f32 %v40, %v243
  %v282 = vadd.f32 %v41, %v246
  %v283 = vadd.f32 %v42, %v251
  %v284 = vadd.f32 %v43, %v254
  %v285 = vadd.f32 %v44, %v259
  %v286 = vadd.f32 %v45, %v262
  %v287 = vadd.f32 %v46, %v267
  %v288 = vadd.f32 %v47, %v270
  %289 = vst [vmem:[#allocation2] sm:$0xff] %v273
  %290 = vst [vmem:[#allocation2 + $0x8] sm:$0xff] %v274
  %291 = vst [vmem:[#allocation2 + $0x10] sm:$0xff] %v275
  %292 = vst [vmem:[#allocation2 + $0x18] sm:$0xff] %v276
  %293 = vst [vmem:[#allocation2 + $0x20] sm:$0xff] %v277
  %294 = vst [vmem:[#allocation2 + $0x28] sm:$0xff] %v278
  %295 = vst [vmem:[#allocation2 + $0x30] sm:$0xff] %v279
  %296 = vst [vmem:[#allocation2 + $0x38] sm:$0xff] %v280
  %297 = vst [vmem:[#allocation2 + $0x40] sm:$0xff] %v281
  %298 = vst [vmem:[#allocation2 + $0x48] sm:$0xff] %v282
  %299 = vst [vmem:[#allocation2 + $0x50] sm:$0xff] %v283
  %300 = vst [vmem:[#allocation2 + $0x58] sm:$0xff] %v284
  %301 = vst [vmem:[#allocation2 + $0x60] sm:$0xff] %v285
  %302 = vst [vmem:[#allocation2 + $0x68] sm:$0xff] %v286
  %303 = vst [vmem:[#allocation2 + $0x70] sm:$0xff] %v287
  %304 = vst [vmem:[#allocation2 + $0x78] sm:$0xff] %v288
  // Predicated region
  $region14: #{graphsage_hgnnplus_forward.3} parent=0 // pred_check
    %p305 = pneg %p12
  $region15: #{graphsage_hgnnplus_forward.3} parent=0 // pred_check_branch
    %307 = sbr.rel (%p305) target = $region17
  $region16: #{graphsage_hgnnplus_forward.3} parent=0 // pred_region
    %v308 = vld [vmem:[#allocation2] sm:$0xff]
    %v309 = vld [vmem:[#allocation2 + $0x8] sm:$0xff]
    %v310 = vld [vmem:[#allocation2 + $0x10] sm:$0xff]
    %v311 = vld [vmem:[#allocation2 + $0x18] sm:$0xff]
    %v312 = vld [vmem:[#allocation2 + $0x20] sm:$0xff]
    %v313 = vld [vmem:[#allocation2 + $0x28] sm:$0xff]
    %v314 = vld [vmem:[#allocation2 + $0x30] sm:$0xff]
    %v315 = vld [vmem:[#allocation2 + $0x38] sm:$0xff]
    %v316 = vld [vmem:[#allocation2 + $0x40] sm:$0xff]
    %v317 = vld [vmem:[#allocation2 + $0x48] sm:$0xff]
    %v318 = vld [vmem:[#allocation2 + $0x50] sm:$0xff]
    %v319 = vld [vmem:[#allocation2 + $0x58] sm:$0xff]
    %v320 = vld [vmem:[#allocation2 + $0x60] sm:$0xff]
    %v321 = vld [vmem:[#allocation2 + $0x68] sm:$0xff]
    %v322 = vld [vmem:[#allocation2 + $0x70] sm:$0xff]
    %v323 = vld [vmem:[#allocation2 + $0x78] sm:$0xff]
    %v324 = vpack.c.bf16 %v309, %v308
    %v325 = vpack.c.bf16 %v311, %v310
    %v326 = vpack.c.bf16 %v313, %v312
    %v327 = vpack.c.bf16 %v315, %v314
    %v328 = vpack.c.bf16 %v317, %v316
    %v329 = vpack.c.bf16 %v319, %v318
    %v330 = vpack.c.bf16 %v321, %v320
    %v331 = vpack.c.bf16 %v323, %v322
    %v340 = vunpack.c.l.b16 %v324
    %v341 = vunpack.c.h.b16 %v324
    %v342 = vunpack.c.l.b16 %v325
    %v343 = vunpack.c.h.b16 %v325
    %v344 = vunpack.c.l.b16 %v326
    %v345 = vunpack.c.h.b16 %v326
    %v346 = vunpack.c.l.b16 %v327
    %v347 = vunpack.c.h.b16 %v327
    %v348 = vunpack.c.l.b16 %v328
    %v349 = vunpack.c.h.b16 %v328
    %v350 = vunpack.c.l.b16 %v329
    %v351 = vunpack.c.h.b16 %v329
    %v352 = vunpack.c.l.b16 %v330
    %v353 = vunpack.c.h.b16 %v330
    %v354 = vunpack.c.l.b16 %v331
    %v355 = vunpack.c.h.b16 %v331
    %v356 = vpack.c.b16 %v340, %v340
    %v357 = vpack.c.b16 %v341, %v341
    %v358 = vpack.c.b16 %v342, %v342
    %v359 = vpack.c.b16 %v343, %v343
    %v360 = vpack.c.b16 %v344, %v344
    %v361 = vpack.c.b16 %v345, %v345
    %v362 = vpack.c.b16 %v346, %v346
    %v363 = vpack.c.b16 %v347, %v347
    %v364 = vpack.c.b16 %v348, %v348
    %v365 = vpack.c.b16 %v349, %v349
    %v366 = vpack.c.b16 %v350, %v350
    %v367 = vpack.c.b16 %v351, %v351
    %v368 = vpack.c.b16 %v352, %v352
    %v369 = vpack.c.b16 %v353, %v353
    %v370 = vpack.c.b16 %v354, %v354
    %v371 = vpack.c.b16 %v355, %v355
    %388 = vst [vmem:[%s2] sm:$0xf] %v356
    %389 = vst [vmem:[%s2 + $0x4] sm:$0xf] %v357
    %390 = vst [vmem:[%s2 + $0x8] sm:$0xf] %v358
    %391 = vst [vmem:[%s2 + $0xc] sm:$0xf] %v359
    %392 = vst [vmem:[%s2 + $0x10] sm:$0xf] %v360
    %393 = vst [vmem:[%s2 + $0x14] sm:$0xf] %v361
    %394 = vst [vmem:[%s2 + $0x18] sm:$0xf] %v362
    %395 = vst [vmem:[%s2 + $0x1c] sm:$0xf] %v363
    %396 = vst [vmem:[%s2 + $0x20] sm:$0xf] %v364
    %397 = vst [vmem:[%s2 + $0x24] sm:$0xf] %v365
    %398 = vst [vmem:[%s2 + $0x28] sm:$0xf] %v366
    %399 = vst [vmem:[%s2 + $0x2c] sm:$0xf] %v367
    %400 = vst [vmem:[%s2 + $0x30] sm:$0xf] %v368
    %401 = vst [vmem:[%s2 + $0x34] sm:$0xf] %v369
    %402 = vst [vmem:[%s2 + $0x38] sm:$0xf] %v370
    %403 = vst [vmem:[%s2 + $0x3c] sm:$0xf] %v371
  $region17: #{graphsage_hgnnplus_forward.3} parent=0 // pred_fallthru
    _
  // Predicated region
  $region18: #{graphsage_hgnnplus_forward.3} parent=0 // pred_check
    _
  $region19: #{graphsage_hgnnplus_forward.3} parent=0 // pred_check_branch
    %405 = sbr.rel (0) target = $region21
  $region20: #{graphsage_hgnnplus_forward.3} parent=0 // pred_region
    _
  $region21: #{graphsage_hgnnplus_forward.3} parent=0 // pred_fallthru
    _
  // Predicated region
  $region22: #{graphsage_hgnnplus_forward.3} parent=0 // pred_check
    _
  $region23: #{graphsage_hgnnplus_forward.3} parent=0 // pred_check_branch
    %407 = sbr.rel (0) target = $region25
  $region24: #{graphsage_hgnnplus_forward.3} parent=0 // pred_region
    _
  $region25: #{graphsage_hgnnplus_forward.3} parent=0 // pred_fallthru
    _

// kernel: graphsage_hgnnplus_forward.4
$region0: #{graphsage_hgnnplus_forward.4}
  #allocation0 [shape = 'u32[]', space=smem, size = 0x4, offset = 0x4, fixed_abs, tag = 'smem constant byte address 0x4 - core index']
  #allocation1 [shape = 'u32[144,128]{1,0:T(1,128)}', space=vmem, size = 0x12000, scoped, tag = 'internal scratch']
  #allocation2 [shape = 'f32[128,256]{1,0:T(8,128)}', space=vmem, size = 0x20000, scoped, tag = 'scratch operand']
  %s0 = inlined_call_operand.vmem [shape: bf16[128,128], index: 0, kind: input, shape index: {}]
  %s1 = inlined_call_operand.vmem [shape: bf16[128,128], index: 1, kind: input, shape index: {}]
  %s2 = inlined_call_operand.vmem [shape: bf16[128,128], index: 2, kind: input, shape index: {}]
  %s3 = inlined_call_operand.vmem [shape: bf16[128,256], index: 3, kind: output, shape index: {}]
  %s4 = sld [smem:[#allocation0]]
  $region30: #{graphsage_hgnnplus_forward.4} parent=0
    _
  %s6 = ssub.s32 1, %s4
  %s7 = scalar_select 0, %s6, %s4
  // Predicated region
  $region2: #{graphsage_hgnnplus_forward.4} parent=0 // pred_check
    _
  $region3: #{graphsage_hgnnplus_forward.4} parent=0 // pred_check_branch
    %9 = sbr.rel (0) target = $region5
  $region4: #{graphsage_hgnnplus_forward.4} parent=0 // pred_region
    _
  $region5: #{graphsage_hgnnplus_forward.4} parent=0 // pred_fallthru
    _
  // Predicated region
  $region6: #{graphsage_hgnnplus_forward.4} parent=0 // pred_check
    _
  $region7: #{graphsage_hgnnplus_forward.4} parent=0 // pred_check_branch
    %11 = sbr.rel (0) target = $region9
  $region8: #{graphsage_hgnnplus_forward.4} parent=0 // pred_region
    _
  $region9: #{graphsage_hgnnplus_forward.4} parent=0 // pred_fallthru
    _
  // Predicated region
  $region10: #{graphsage_hgnnplus_forward.4} parent=0 // pred_check
    _
  $region11: #{graphsage_hgnnplus_forward.4} parent=0 // pred_check_branch
    %13 = sbr.rel (0) target = $region13
  $region12: #{graphsage_hgnnplus_forward.4} parent=0 // pred_region
    _
  $region13: #{graphsage_hgnnplus_forward.4} parent=0 // pred_fallthru
    _
  %p15 = scmp.eq.s32.totalorder 0, 0
  // Predicated region
  $region14: #{graphsage_hgnnplus_forward.4} parent=0 // pred_check
    %p16 = pneg %p15
  $region15: #{graphsage_hgnnplus_forward.4} parent=0 // pred_check_branch
    %18 = sbr.rel (%p16) target = $region17
  $region16: #{graphsage_hgnnplus_forward.4} parent=0 // pred_region
    %19 = vst [vmem:[#allocation2] sm:$0xff] 0.0
    %20 = vst [vmem:[#allocation2 + $0x8] sm:$0xff] 0.0
    %21 = vst [vmem:[#allocation2 + $0x10] sm:$0xff] 0.0
    %22 = vst [vmem:[#allocation2 + $0x18] sm:$0xff] 0.0
    %23 = vst [vmem:[#allocation2 + $0x20] sm:$0xff] 0.0
    %24 = vst [vmem:[#allocation2 + $0x28] sm:$0xff] 0.0
    %25 = vst [vmem:[#allocation2 + $0x30] sm:$0xff] 0.0
    %26 = vst [vmem:[#allocation2 + $0x38] sm:$0xff] 0.0
    %27 = vst [vmem:[#allocation2 + $0x40] sm:$0xff] 0.0
    %28 = vst [vmem:[#allocation2 + $0x48] sm:$0xff] 0.0
    %29 = vst [vmem:[#allocation2 + $0x50] sm:$0xff] 0.0
    %30 = vst [vmem:[#allocation2 + $0x58] sm:$0xff] 0.0
    %31 = vst [vmem:[#allocation2 + $0x60] sm:$0xff] 0.0
    %32 = vst [vmem:[#allocation2 + $0x68] sm:$0xff] 0.0
    %33 = vst [vmem:[#allocation2 + $0x70] sm:$0xff] 0.0
    %34 = vst [vmem:[#allocation2 + $0x78] sm:$0xff] 0.0
    %35 = vst [vmem:[#allocation2 + $0x80] sm:$0xff] 0.0
    %36 = vst [vmem:[#allocation2 + $0x88] sm:$0xff] 0.0
    %37 = vst [vmem:[#allocation2 + $0x90] sm:$0xff] 0.0
    %38 = vst [vmem:[#allocation2 + $0x98] sm:$0xff] 0.0
    %39 = vst [vmem:[#allocation2 + $0xa0] sm:$0xff] 0.0
    %40 = vst [vmem:[#allocation2 + $0xa8] sm:$0xff] 0.0
    %41 = vst [vmem:[#allocation2 + $0xb0] sm:$0xff] 0.0
    %42 = vst [vmem:[#allocation2 + $0xb8] sm:$0xff] 0.0
    %43 = vst [vmem:[#allocation2 + $0xc0] sm:$0xff] 0.0
    %44 = vst [vmem:[#allocation2 + $0xc8] sm:$0xff] 0.0
    %45 = vst [vmem:[#allocation2 + $0xd0] sm:$0xff] 0.0
    %46 = vst [vmem:[#allocation2 + $0xd8] sm:$0xff] 0.0
    %47 = vst [vmem:[#allocation2 + $0xe0] sm:$0xff] 0.0
    %48 = vst [vmem:[#allocation2 + $0xe8] sm:$0xff] 0.0
    %49 = vst [vmem:[#allocation2 + $0xf0] sm:$0xff] 0.0
    %50 = vst [vmem:[#allocation2 + $0xf8] sm:$0xff] 0.0
  $region17: #{graphsage_hgnnplus_forward.4} parent=0 // pred_fallthru
    _
  %v51 = vld [vmem:[%s1] sm:$0xf]
  %v52 = vld [vmem:[%s1 + $0x4] sm:$0xf]
  %v53 = vld [vmem:[%s1 + $0x8] sm:$0xf]
  %v54 = vld [vmem:[%s1 + $0xc] sm:$0xf]
  %v55 = vld [vmem:[%s1 + $0x10] sm:$0xf]
  %v56 = vld [vmem:[%s1 + $0x14] sm:$0xf]
  %v57 = vld [vmem:[%s1 + $0x18] sm:$0xf]
  %v58 = vld [vmem:[%s1 + $0x1c] sm:$0xf]
  %v59 = vld [vmem:[%s1 + $0x20] sm:$0xf]
  %v60 = vld [vmem:[%s1 + $0x24] sm:$0xf]
  %v61 = vld [vmem:[%s1 + $0x28] sm:$0xf]
  %v62 = vld [vmem:[%s1 + $0x2c] sm:$0xf]
  %v63 = vld [vmem:[%s1 + $0x30] sm:$0xf]
  %v64 = vld [vmem:[%s1 + $0x34] sm:$0xf]
  %v65 = vld [vmem:[%s1 + $0x38] sm:$0xf]
  %v66 = vld [vmem:[%s1 + $0x3c] sm:$0xf]
  %v67 = vld [vmem:[%s2] sm:$0xf]
  %v68 = vld [vmem:[%s2 + $0x4] sm:$0xf]
  %v69 = vld [vmem:[%s2 + $0x8] sm:$0xf]
  %v70 = vld [vmem:[%s2 + $0xc] sm:$0xf]
  %v71 = vld [vmem:[%s2 + $0x10] sm:$0xf]
  %v72 = vld [vmem:[%s2 + $0x14] sm:$0xf]
  %v73 = vld [vmem:[%s2 + $0x18] sm:$0xf]
  %v74 = vld [vmem:[%s2 + $0x1c] sm:$0xf]
  %v75 = vld [vmem:[%s2 + $0x20] sm:$0xf]
  %v76 = vld [vmem:[%s2 + $0x24] sm:$0xf]
  %v77 = vld [vmem:[%s2 + $0x28] sm:$0xf]
  %v78 = vld [vmem:[%s2 + $0x2c] sm:$0xf]
  %v79 = vld [vmem:[%s2 + $0x30] sm:$0xf]
  %v80 = vld [vmem:[%s2 + $0x34] sm:$0xf]
  %v81 = vld [vmem:[%s2 + $0x38] sm:$0xf]
  %v82 = vld [vmem:[%s2 + $0x3c] sm:$0xf]
  %v99 = vunpack.c.l.b16 %v51
  %v100 = vunpack.c.l.b16 %v52
  %v101 = vunpack.c.l.b16 %v53
  %v102 = vunpack.c.l.b16 %v54
  %v103 = vunpack.c.l.b16 %v55
  %v104 = vunpack.c.l.b16 %v56
  %v105 = vunpack.c.l.b16 %v57
  %v106 = vunpack.c.l.b16 %v58
  %v107 = vunpack.c.l.b16 %v59
  %v108 = vunpack.c.l.b16 %v60
  %v109 = vunpack.c.l.b16 %v61
  %v110 = vunpack.c.l.b16 %v62
  %v111 = vunpack.c.l.b16 %v63
  %v112 = vunpack.c.l.b16 %v64
  %v113 = vunpack.c.l.b16 %v65
  %v114 = vunpack.c.l.b16 %v66
  %v115 = vpack.c.b16 %v100, %v99
  %v116 = vpack.c.b16 %v102, %v101
  %v117 = vpack.c.b16 %v104, %v103
  %v118 = vpack.c.b16 %v106, %v105
  %v119 = vpack.c.b16 %v108, %v107
  %v120 = vpack.c.b16 %v110, %v109
  %v121 = vpack.c.b16 %v112, %v111
  %v122 = vpack.c.b16 %v114, %v113
  %v147 = vunpack.c.l.b16 %v67
  %v148 = vunpack.c.l.b16 %v68
  %v149 = vunpack.c.l.b16 %v69
  %v150 = vunpack.c.l.b16 %v70
  %v151 = vunpack.c.l.b16 %v71
  %v152 = vunpack.c.l.b16 %v72
  %v153 = vunpack.c.l.b16 %v73
  %v154 = vunpack.c.l.b16 %v74
  %v155 = vunpack.c.l.b16 %v75
  %v156 = vunpack.c.l.b16 %v76
  %v157 = vunpack.c.l.b16 %v77
  %v158 = vunpack.c.l.b16 %v78
  %v159 = vunpack.c.l.b16 %v79
  %v160 = vunpack.c.l.b16 %v80
  %v161 = vunpack.c.l.b16 %v81
  %v162 = vunpack.c.l.b16 %v82
  %v163 = vpack.c.b16 %v148, %v147
  %v164 = vpack.c.b16 %v150, %v149
  %v165 = vpack.c.b16 %v152, %v151
  %v166 = vpack.c.b16 %v154, %v153
  %v167 = vpack.c.b16 %v156, %v155
  %v168 = vpack.c.b16 %v158, %v157
  %v169 = vpack.c.b16 %v160, %v159
  %v170 = vpack.c.b16 %v162, %v161
  %v179 = vld [vmem:[#allocation2] sm:$0xff]
  %v180 = vld [vmem:[#allocation2 + $0x8] sm:$0xff]
  %v181 = vld [vmem:[#allocation2 + $0x10] sm:$0xff]
  %v182 = vld [vmem:[#allocation2 + $0x18] sm:$0xff]
  %v183 = vld [vmem:[#allocation2 + $0x20] sm:$0xff]
  %v184 = vld [vmem:[#allocation2 + $0x28] sm:$0xff]
  %v185 = vld [vmem:[#allocation2 + $0x30] sm:$0xff]
  %v186 = vld [vmem:[#allocation2 + $0x38] sm:$0xff]
  %v187 = vld [vmem:[#allocation2 + $0x40] sm:$0xff]
  %v188 = vld [vmem:[#allocation2 + $0x48] sm:$0xff]
  %v189 = vld [vmem:[#allocation2 + $0x50] sm:$0xff]
  %v190 = vld [vmem:[#allocation2 + $0x58] sm:$0xff]
  %v191 = vld [vmem:[#allocation2 + $0x60] sm:$0xff]
  %v192 = vld [vmem:[#allocation2 + $0x68] sm:$0xff]
  %v193 = vld [vmem:[#allocation2 + $0x70] sm:$0xff]
  %v194 = vld [vmem:[#allocation2 + $0x78] sm:$0xff]
  %v195 = vld [vmem:[#allocation2 + $0x80] sm:$0xff]
  %v196 = vld [vmem:[#allocation2 + $0x88] sm:$0xff]
  %v197 = vld [vmem:[#allocation2 + $0x90] sm:$0xff]
  %v198 = vld [vmem:[#allocation2 + $0x98] sm:$0xff]
  %v199 = vld [vmem:[#allocation2 + $0xa0] sm:$0xff]
  %v200 = vld [vmem:[#allocation2 + $0xa8] sm:$0xff]
  %v201 = vld [vmem:[#allocation2 + $0xb0] sm:$0xff]
  %v202 = vld [vmem:[#allocation2 + $0xb8] sm:$0xff]
  %v203 = vld [vmem:[#allocation2 + $0xc0] sm:$0xff]
  %v204 = vld [vmem:[#allocation2 + $0xc8] sm:$0xff]
  %v205 = vld [vmem:[#allocation2 + $0xd0] sm:$0xff]
  %v206 = vld [vmem:[#allocation2 + $0xd8] sm:$0xff]
  %v207 = vld [vmem:[#allocation2 + $0xe0] sm:$0xff]
  %v208 = vld [vmem:[#allocation2 + $0xe8] sm:$0xff]
  %v209 = vld [vmem:[#allocation2 + $0xf0] sm:$0xff]
  %v210 = vld [vmem:[#allocation2 + $0xf8] sm:$0xff]
  %v211 = vld [vmem:[%s0] sm:$0xf]
  %v212 = vld [vmem:[%s0 + $0x4] sm:$0xf]
  %v213 = vld [vmem:[%s0 + $0x8] sm:$0xf]
  %v214 = vld [vmem:[%s0 + $0xc] sm:$0xf]
  %v215 = vld [vmem:[%s0 + $0x10] sm:$0xf]
  %v216 = vld [vmem:[%s0 + $0x14] sm:$0xf]
  %v217 = vld [vmem:[%s0 + $0x18] sm:$0xf]
  %v218 = vld [vmem:[%s0 + $0x1c] sm:$0xf]
  %v219 = vld [vmem:[%s0 + $0x20] sm:$0xf]
  %v220 = vld [vmem:[%s0 + $0x24] sm:$0xf]
  %v221 = vld [vmem:[%s0 + $0x28] sm:$0xf]
  %v222 = vld [vmem:[%s0 + $0x2c] sm:$0xf]
  %v223 = vld [vmem:[%s0 + $0x30] sm:$0xf]
  %v224 = vld [vmem:[%s0 + $0x34] sm:$0xf]
  %v225 = vld [vmem:[%s0 + $0x38] sm:$0xf]
  %v226 = vld [vmem:[%s0 + $0x3c] sm:$0xf]
  %v243 = vunpack.c.l.b16 %v211
  %v244 = vunpack.c.l.b16 %v212
  %v245 = vunpack.c.l.b16 %v213
  %v246 = vunpack.c.l.b16 %v214
  %v247 = vunpack.c.l.b16 %v215
  %v248 = vunpack.c.l.b16 %v216
  %v249 = vunpack.c.l.b16 %v217
  %v250 = vunpack.c.l.b16 %v218
  %v251 = vunpack.c.l.b16 %v219
  %v252 = vunpack.c.l.b16 %v220
  %v253 = vunpack.c.l.b16 %v221
  %v254 = vunpack.c.l.b16 %v222
  %v255 = vunpack.c.l.b16 %v223
  %v256 = vunpack.c.l.b16 %v224
  %v257 = vunpack.c.l.b16 %v225
  %v258 = vunpack.c.l.b16 %v226
  %v259 = vpack.c.b16 %v244, %v243
  %v260 = vpack.c.b16 %v246, %v245
  %v261 = vpack.c.b16 %v248, %v247
  %v262 = vpack.c.b16 %v250, %v249
  %v263 = vpack.c.b16 %v252, %v251
  %v264 = vpack.c.b16 %v254, %v253
  %v265 = vpack.c.b16 %v256, %v255
  %v266 = vpack.c.b16 %v258, %v257
  %275 = vmatprep.subr.bf16.mxu0 %v163
  %276 = vmatpush1.bf16.msra.mxu0 %v115
  %277 = vmatprep.subr.bf16.mxu0 %v164
  %278 = vmatpush1.bf16.msra.mxu0 %v116
  %279 = vmatprep.subr.bf16.mxu0 %v165
  %280 = vmatpush1.bf16.msra.mxu0 %v117
  %281 = vmatprep.subr.bf16.mxu0 %v166
  %282 = vmatpush1.bf16.msra.mxu0 %v118
  %283 = vmatprep.subr.bf16.mxu0 %v167
  %284 = vmatpush1.bf16.msra.mxu0 %v119
  %285 = vmatprep.subr.bf16.mxu0 %v168
  %286 = vmatpush1.bf16.msra.mxu0 %v120
  %287 = vmatprep.subr.bf16.mxu0 %v169
  %288 = vmatpush1.bf16.msra.mxu0 %v121
  %289 = vmatprep.subr.bf16.mxu0 %v170
  %290 = vmatpush1.bf16.msra.mxu0 %v122
  %291 = vmatprep.subr.bf16.mxu0 0
  %292 = vmatpush1.bf16.msra.mxu0 0
  %293 = vmatprep.subr.bf16.mxu0 0
  %294 = vmatpush1.bf16.msra.mxu0 0
  %295 = vmatprep.subr.bf16.mxu0 0
  %296 = vmatpush1.bf16.msra.mxu0 0
  %297 = vmatprep.subr.bf16.mxu0 0
  %298 = vmatpush1.bf16.msra.mxu0 0
  %299 = vmatprep.subr.bf16.mxu0 0
  %300 = vmatpush1.bf16.msra.mxu0 0
  %301 = vmatprep.subr.bf16.mxu0 0
  %302 = vmatpush1.bf16.msra.mxu0 0
  %303 = vmatprep.subr.bf16.mxu0 0
  %304 = vmatpush1.bf16.msra.mxu0 0
  %305 = vmatprep.subr.bf16.mxu0 0
  %306 = vmatpush1.bf16.msra.mxu0 0
  %307 = vmatprep.mubr.bf16.mxu0 0
  %308 = vmatmul.mubr.bf16.gmra.mrb[0].mxu0 %v259
  %v309 = vpop.f32.mrb[0].mxu0
  %v310 = vadd.f32 0.0, %v309
  %v311 = vpop.f32.mrb[0].mxu0
  %v312 = vadd.f32 0.0, %v311
  %v313 = vpop.f32.mrb[0].mxu0
  %v314 = vadd.f32 0.0, %v313
  %v315 = vpop.f32.mrb[0].mxu0
  %v316 = vadd.f32 0.0, %v315
  %317 = vmatprep.mubr.bf16.mxu0 0
  %318 = vmatmul.mubr.bf16.gmra.mrb[0].mxu0 %v260
  %v319 = vpop.f32.mrb[0].mxu0
  %v320 = vadd.f32 0.0, %v319
  %v321 = vpop.f32.mrb[0].mxu0
  %v322 = vadd.f32 0.0, %v321
  %v323 = vpop.f32.mrb[0].mxu0
  %v324 = vadd.f32 0.0, %v323
  %v325 = vpop.f32.mrb[0].mxu0
  %v326 = vadd.f32 0.0, %v325
  %327 = vmatprep.mubr.bf16.mxu0 0
  %328 = vmatmul.mubr.bf16.gmra.mrb[0].mxu0 %v261
  %v329 = vpop.f32.mrb[0].mxu0
  %v330 = vadd.f32 0.0, %v329
  %v331 = vpop.f32.mrb[0].mxu0
  %v332 = vadd.f32 0.0, %v331
  %v333 = vpop.f32.mrb[0].mxu0
  %v334 = vadd.f32 0.0, %v333
  %v335 = vpop.f32.mrb[0].mxu0
  %v336 = vadd.f32 0.0, %v335
  %337 = vmatprep.mubr.bf16.mxu0 0
  %338 = vmatmul.mubr.bf16.gmra.mrb[0].mxu0 %v262
  %v339 = vpop.f32.mrb[0].mxu0
  %v340 = vadd.f32 0.0, %v339
  %v341 = vpop.f32.mrb[0].mxu0
  %v342 = vadd.f32 0.0, %v341
  %v343 = vpop.f32.mrb[0].mxu0
  %v344 = vadd.f32 0.0, %v343
  %v345 = vpop.f32.mrb[0].mxu0
  %v346 = vadd.f32 0.0, %v345
  %347 = vmatprep.mubr.bf16.mxu0 0
  %348 = vmatmul.mubr.bf16.gmra.mrb[0].mxu0 %v263
  %v349 = vpop.f32.mrb[0].mxu0
  %v350 = vadd.f32 0.0, %v349
  %v351 = vpop.f32.mrb[0].mxu0
  %v352 = vadd.f32 0.0, %v351
  %v353 = vpop.f32.mrb[0].mxu0
  %v354 = vadd.f32 0.0, %v353
  %v355 = vpop.f32.mrb[0].mxu0
  %v356 = vadd.f32 0.0, %v355
  %357 = vmatprep.mubr.bf16.mxu0 0
  %358 = vmatmul.mubr.bf16.gmra.mrb[0].mxu0 %v264
  %v359 = vpop.f32.mrb[0].mxu0
  %v360 = vadd.f32 0.0, %v359
  %v361 = vpop.f32.mrb[0].mxu0
  %v362 = vadd.f32 0.0, %v361
  %v363 = vpop.f32.mrb[0].mxu0
  %v364 = vadd.f32 0.0, %v363
  %v365 = vpop.f32.mrb[0].mxu0
  %v366 = vadd.f32 0.0, %v365
  %367 = vmatprep.mubr.bf16.mxu0 0
  %368 = vmatmul.mubr.bf16.gmra.mrb[0].mxu0 %v265
  %v369 = vpop.f32.mrb[0].mxu0
  %v370 = vadd.f32 0.0, %v369
  %v371 = vpop.f32.mrb[0].mxu0
  %v372 = vadd.f32 0.0, %v371
  %v373 = vpop.f32.mrb[0].mxu0
  %v374 = vadd.f32 0.0, %v373
  %v375 = vpop.f32.mrb[0].mxu0
  %v376 = vadd.f32 0.0, %v375
  %377 = vmatprep.mubr.bf16.mxu0 0
  %378 = vmatmul.mubr.bf16.gmra.mrb[0].mxu0 %v266
  %v379 = vpop.f32.mrb[0].mxu0
  %v380 = vadd.f32 0.0, %v379
  %v381 = vpop.f32.mrb[0].mxu0
  %v382 = vadd.f32 0.0, %v381
  %v383 = vpop.f32.mrb[0].mxu0
  %v384 = vadd.f32 0.0, %v383
  %v385 = vpop.f32.mrb[0].mxu0
  %v386 = vadd.f32 0.0, %v385
  %387 = vdwg.mxu0
  %v388 = vadd.f32 %v179, %v310
  %v389 = vadd.f32 %v180, %v312
  %v390 = vadd.f32 %v181, %v314
  %v391 = vadd.f32 %v182, %v316
  %v392 = vadd.f32 %v183, %v320
  %v393 = vadd.f32 %v184, %v322
  %v394 = vadd.f32 %v185, %v324
  %v395 = vadd.f32 %v186, %v326
  %v396 = vadd.f32 %v187, %v330
  %v397 = vadd.f32 %v188, %v332
  %v398 = vadd.f32 %v189, %v334
  %v399 = vadd.f32 %v190, %v336
  %v400 = vadd.f32 %v191, %v340
  %v401 = vadd.f32 %v192, %v342
  %v402 = vadd.f32 %v193, %v344
  %v403 = vadd.f32 %v194, %v346
  %v404 = vadd.f32 %v195, %v350
  %v405 = vadd.f32 %v196, %v352
  %v406 = vadd.f32 %v197, %v354
  %v407 = vadd.f32 %v198, %v356
  %v408 = vadd.f32 %v199, %v360
  %v409 = vadd.f32 %v200, %v362
  %v410 = vadd.f32 %v201, %v364
  %v411 = vadd.f32 %v202, %v366
  %v412 = vadd.f32 %v203, %v370
  %v413 = vadd.f32 %v204, %v372
  %v414 = vadd.f32 %v205, %v374
  %v415 = vadd.f32 %v206, %v376
  %v416 = vadd.f32 %v207, %v380
  %v417 = vadd.f32 %v208, %v382
  %v418 = vadd.f32 %v209, %v384
  %v419 = vadd.f32 %v210, %v386
  %420 = vst [vmem:[#allocation2] sm:$0xff] %v388
  %421 = vst [vmem:[#allocation2 + $0x8] sm:$0xff] %v389
  %422 = vst [vmem:[#allocation2 + $0x10] sm:$0xff] %v390
  %423 = vst [vmem:[#allocation2 + $0x18] sm:$0xff] %v391
  %424 = vst [vmem:[#allocation2 + $0x20] sm:$0xff] %v392
  %425 = vst [vmem:[#allocation2 + $0x28] sm:$0xff] %v393
  %426 = vst [vmem:[#allocation2 + $0x30] sm:$0xff] %v394
  %427 = vst [vmem:[#allocation2 + $0x38] sm:$0xff] %v395
  %428 = vst [vmem:[#allocation2 + $0x40] sm:$0xff] %v396
  %429 = vst [vmem:[#allocation2 + $0x48] sm:$0xff] %v397
  %430 = vst [vmem:[#allocation2 + $0x50] sm:$0xff] %v398
  %431 = vst [vmem:[#allocation2 + $0x58] sm:$0xff] %v399
  %432 = vst [vmem:[#allocation2 + $0x60] sm:$0xff] %v400
  %433 = vst [vmem:[#allocation2 + $0x68] sm:$0xff] %v401
  %434 = vst [vmem:[#allocation2 + $0x70] sm:$0xff] %v402
  %435 = vst [vmem:[#allocation2 + $0x78] sm:$0xff] %v403
  %436 = vst [vmem:[#allocation2 + $0x80] sm:$0xff] %v404
  %437 = vst [vmem:[#allocation2 + $0x88] sm:$0xff] %v405
  %438 = vst [vmem:[#allocation2 + $0x90] sm:$0xff] %v406
  %439 = vst [vmem:[#allocation2 + $0x98] sm:$0xff] %v407
  %440 = vst [vmem:[#allocation2 + $0xa0] sm:$0xff] %v408
  %441 = vst [vmem:[#allocation2 + $0xa8] sm:$0xff] %v409
  %442 = vst [vmem:[#allocation2 + $0xb0] sm:$0xff] %v410
  %443 = vst [vmem:[#allocation2 + $0xb8] sm:$0xff] %v411
  %444 = vst [vmem:[#allocation2 + $0xc0] sm:$0xff] %v412
  %445 = vst [vmem:[#allocation2 + $0xc8] sm:$0xff] %v413
  %446 = vst [vmem:[#allocation2 + $0xd0] sm:$0xff] %v414
  %447 = vst [vmem:[#allocation2 + $0xd8] sm:$0xff] %v415
  %448 = vst [vmem:[#allocation2 + $0xe0] sm:$0xff] %v416
  %449 = vst [vmem:[#allocation2 + $0xe8] sm:$0xff] %v417
  %450 = vst [vmem:[#allocation2 + $0xf0] sm:$0xff] %v418
  %451 = vst [vmem:[#allocation2 + $0xf8] sm:$0xff] %v419
  // Predicated region
  $region18: #{graphsage_hgnnplus_forward.4} parent=0 // pred_check
    %p452 = pneg %p15
  $region19: #{graphsage_hgnnplus_forward.4} parent=0 // pred_check_branch
    %454 = sbr.rel (%p452) target = $region21
  $region20: #{graphsage_hgnnplus_forward.4} parent=0 // pred_region
    %v455 = vld [vmem:[#allocation2] sm:$0xff]
    %v456 = vld [vmem:[#allocation2 + $0x8] sm:$0xff]
    %v457 = vld [vmem:[#allocation2 + $0x10] sm:$0xff]
    %v458 = vld [vmem:[#allocation2 + $0x18] sm:$0xff]
    %v459 = vld [vmem:[#allocation2 + $0x20] sm:$0xff]
    %v460 = vld [vmem:[#allocation2 + $0x28] sm:$0xff]
    %v461 = vld [vmem:[#allocation2 + $0x30] sm:$0xff]
    %v462 = vld [vmem:[#allocation2 + $0x38] sm:$0xff]
    %v463 = vld [vmem:[#allocation2 + $0x40] sm:$0xff]
    %v464 = vld [vmem:[#allocation2 + $0x48] sm:$0xff]
    %v465 = vld [vmem:[#allocation2 + $0x50] sm:$0xff]
    %v466 = vld [vmem:[#allocation2 + $0x58] sm:$0xff]
    %v467 = vld [vmem:[#allocation2 + $0x60] sm:$0xff]
    %v468 = vld [vmem:[#allocation2 + $0x68] sm:$0xff]
    %v469 = vld [vmem:[#allocation2 + $0x70] sm:$0xff]
    %v470 = vld [vmem:[#allocation2 + $0x78] sm:$0xff]
    %v471 = vld [vmem:[#allocation2 + $0x80] sm:$0xff]
    %v472 = vld [vmem:[#allocation2 + $0x88] sm:$0xff]
    %v473 = vld [vmem:[#allocation2 + $0x90] sm:$0xff]
    %v474 = vld [vmem:[#allocation2 + $0x98] sm:$0xff]
    %v475 = vld [vmem:[#allocation2 + $0xa0] sm:$0xff]
    %v476 = vld [vmem:[#allocation2 + $0xa8] sm:$0xff]
    %v477 = vld [vmem:[#allocation2 + $0xb0] sm:$0xff]
    %v478 = vld [vmem:[#allocation2 + $0xb8] sm:$0xff]
    %v479 = vld [vmem:[#allocation2 + $0xc0] sm:$0xff]
    %v480 = vld [vmem:[#allocation2 + $0xc8] sm:$0xff]
    %v481 = vld [vmem:[#allocation2 + $0xd0] sm:$0xff]
    %v482 = vld [vmem:[#allocation2 + $0xd8] sm:$0xff]
    %v483 = vld [vmem:[#allocation2 + $0xe0] sm:$0xff]
    %v484 = vld [vmem:[#allocation2 + $0xe8] sm:$0xff]
    %v485 = vld [vmem:[#allocation2 + $0xf0] sm:$0xff]
    %v486 = vld [vmem:[#allocation2 + $0xf8] sm:$0xff]
    %v487 = vpack.c.bf16 %v457, %v455
    %v488 = vpack.c.bf16 %v458, %v456
    %v489 = vpack.c.bf16 %v461, %v459
    %v490 = vpack.c.bf16 %v462, %v460
    %v491 = vpack.c.bf16 %v465, %v463
    %v492 = vpack.c.bf16 %v466, %v464
    %v493 = vpack.c.bf16 %v469, %v467
    %v494 = vpack.c.bf16 %v470, %v468
    %v495 = vpack.c.bf16 %v473, %v471
    %v496 = vpack.c.bf16 %v474, %v472
    %v497 = vpack.c.bf16 %v477, %v475
    %v498 = vpack.c.bf16 %v478, %v476
    %v499 = vpack.c.bf16 %v481, %v479
    %v500 = vpack.c.bf16 %v482, %v480
    %v501 = vpack.c.bf16 %v485, %v483
    %v502 = vpack.c.bf16 %v486, %v484
    %v519 = vunpack.c.l.b16 %v487
    %v520 = vunpack.c.l.b16 %v488
    %v521 = vunpack.c.h.b16 %v487
    %v522 = vunpack.c.h.b16 %v488
    %v523 = vunpack.c.l.b16 %v489
    %v524 = vunpack.c.l.b16 %v490
    %v525 = vunpack.c.h.b16 %v489
    %v526 = vunpack.c.h.b16 %v490
    %v527 = vunpack.c.l.b16 %v491
    %v528 = vunpack.c.l.b16 %v492
    %v529 = vunpack.c.h.b16 %v491
    %v530 = vunpack.c.h.b16 %v492
    %v531 = vunpack.c.l.b16 %v493
    %v532 = vunpack.c.l.b16 %v494
    %v533 = vunpack.c.h.b16 %v493
    %v534 = vunpack.c.h.b16 %v494
    %v535 = vunpack.c.l.b16 %v495
    %v536 = vunpack.c.l.b16 %v496
    %v537 = vunpack.c.h.b16 %v495
    %v538 = vunpack.c.h.b16 %v496
    %v539 = vunpack.c.l.b16 %v497
    %v540 = vunpack.c.l.b16 %v498
    %v541 = vunpack.c.h.b16 %v497
    %v542 = vunpack.c.h.b16 %v498
    %v543 = vunpack.c.l.b16 %v499
    %v544 = vunpack.c.l.b16 %v500
    %v545 = vunpack.c.h.b16 %v499
    %v546 = vunpack.c.h.b16 %v500
    %v547 = vunpack.c.l.b16 %v501
    %v548 = vunpack.c.l.b16 %v502
    %v549 = vunpack.c.h.b16 %v501
    %v550 = vunpack.c.h.b16 %v502
    %v551 = vpack.c.b16 %v520, %v519
    %v552 = vpack.c.b16 %v522, %v521
    %v553 = vpack.c.b16 %v524, %v523
    %v554 = vpack.c.b16 %v526, %v525
    %v555 = vpack.c.b16 %v528, %v527
    %v556 = vpack.c.b16 %v530, %v529
    %v557 = vpack.c.b16 %v532, %v531
    %v558 = vpack.c.b16 %v534, %v533
    %v559 = vpack.c.b16 %v536, %v535
    %v560 = vpack.c.b16 %v538, %v537
    %v561 = vpack.c.b16 %v540, %v539
    %v562 = vpack.c.b16 %v542, %v541
    %v563 = vpack.c.b16 %v544, %v543
    %v564 = vpack.c.b16 %v546, %v545
    %v565 = vpack.c.b16 %v548, %v547
    %v566 = vpack.c.b16 %v550, %v549
    %583 = vst [vmem:[%s3] sm:$0xff] %v551
    %584 = vst [vmem:[%s3 + $0x8] sm:$0xff] %v552
    %585 = vst [vmem:[%s3 + $0x10] sm:$0xff] %v553
    %586 = vst [vmem:[%s3 + $0x18] sm:$0xff] %v554
    %587 = vst [vmem:[%s3 + $0x20] sm:$0xff] %v555
    %588 = vst [vmem:[%s3 + $0x28] sm:$0xff] %v556
    %589 = vst [vmem:[%s3 + $0x30] sm:$0xff] %v557
    %590 = vst [vmem:[%s3 + $0x38] sm:$0xff] %v558
    %591 = vst [vmem:[%s3 + $0x40] sm:$0xff] %v559
    %592 = vst [vmem:[%s3 + $0x48] sm:$0xff] %v560
    %593 = vst [vmem:[%s3 + $0x50] sm:$0xff] %v561
    %594 = vst [vmem:[%s3 + $0x58] sm:$0xff] %v562
    %595 = vst [vmem:[%s3 + $0x60] sm:$0xff] %v563
    %596 = vst [vmem:[%s3 + $0x68] sm:$0xff] %v564
    %597 = vst [vmem:[%s3 + $0x70] sm:$0xff] %v565
    %598 = vst [vmem:[%s3 + $0x78] sm:$0xff] %v566
  $region21: #{graphsage_hgnnplus_forward.4} parent=0 // pred_fallthru
    _
  // Predicated region
  $region22: #{graphsage_hgnnplus_forward.4} parent=0 // pred_check
    _
  $region23: #{graphsage_hgnnplus_forward.4} parent=0 // pred_check_branch
    %600 = sbr.rel (0) target = $region25
  $region24: #{graphsage_hgnnplus_forward.4} parent=0 // pred_region
    _
  $region25: #{graphsage_hgnnplus_forward.4} parent=0 // pred_fallthru
    _
  // Predicated region
  $region26: #{graphsage_hgnnplus_forward.4} parent=0 // pred_check
    _
  $region27: #{graphsage_hgnnplus_forward.4} parent=0 // pred_check_branch
    %602 = sbr.rel (0) target = $region29
  $region28: #{graphsage_hgnnplus_forward.4} parent=0 // pred_region
    _
  $region29: #{graphsage_hgnnplus_forward.4} parent=0 // pred_fallthru
    _

// kernel: graphsage_hgnnplus_forward.5
$region0: #{graphsage_hgnnplus_forward.5}
  #allocation0 [shape = 'u32[]', space=smem, size = 0x4, offset = 0x4, fixed_abs, tag = 'smem constant byte address 0x4 - core index']
  #allocation1 [shape = 'u32[144,128]{1,0:T(1,128)}', space=vmem, size = 0x12000, scoped, tag = 'internal scratch']
  #allocation2 [shape = 'f32[128,256]{1,0:T(8,128)}', space=vmem, size = 0x20000, scoped, tag = 'scratch operand']
  %s0 = inlined_call_operand.vmem [shape: bf16[128,128], index: 0, kind: input, shape index: {}]
  %s1 = inlined_call_operand.vmem [shape: bf16[128,256], index: 1, kind: input, shape index: {}]
  %s2 = inlined_call_operand.vmem [shape: bf16[256,128], index: 2, kind: input, shape index: {}]
  %s3 = inlined_call_operand.vmem [shape: f32[1,128], index: 3, kind: input, shape index: {}]
  %s4 = inlined_call_operand.vmem [shape: f32[128,128], index: 4, kind: output, shape index: {}]
  %s5 = sld [smem:[#allocation0]]
  $region34: #{graphsage_hgnnplus_forward.5} parent=0
    _
  %s7 = ssub.s32 1, %s5
  %s8 = scalar_select 0, %s7, %s5
  // Predicated region
  $region2: #{graphsage_hgnnplus_forward.5} parent=0 // pred_check
    _
  $region3: #{graphsage_hgnnplus_forward.5} parent=0 // pred_check_branch
    %10 = sbr.rel (0) target = $region5
  $region4: #{graphsage_hgnnplus_forward.5} parent=0 // pred_region
    _
  $region5: #{graphsage_hgnnplus_forward.5} parent=0 // pred_fallthru
    _
  // Predicated region
  $region6: #{graphsage_hgnnplus_forward.5} parent=0 // pred_check
    _
  $region7: #{graphsage_hgnnplus_forward.5} parent=0 // pred_check_branch
    %12 = sbr.rel (0) target = $region9
  $region8: #{graphsage_hgnnplus_forward.5} parent=0 // pred_region
    _
  $region9: #{graphsage_hgnnplus_forward.5} parent=0 // pred_fallthru
    _
  // Predicated region
  $region10: #{graphsage_hgnnplus_forward.5} parent=0 // pred_check
    _
  $region11: #{graphsage_hgnnplus_forward.5} parent=0 // pred_check_branch
    %14 = sbr.rel (0) target = $region13
  $region12: #{graphsage_hgnnplus_forward.5} parent=0 // pred_region
    _
  $region13: #{graphsage_hgnnplus_forward.5} parent=0 // pred_fallthru
    _
  // Predicated region
  $region14: #{graphsage_hgnnplus_forward.5} parent=0 // pred_check
    _
  $region15: #{graphsage_hgnnplus_forward.5} parent=0 // pred_check_branch
    %16 = sbr.rel (0) target = $region17
  $region16: #{graphsage_hgnnplus_forward.5} parent=0 // pred_region
    _
  $region17: #{graphsage_hgnnplus_forward.5} parent=0 // pred_fallthru
    _
  %p18 = scmp.eq.s32.totalorder 0, 0
  // Predicated region
  $region18: #{graphsage_hgnnplus_forward.5} parent=0 // pred_check
    %p19 = pneg %p18
  $region19: #{graphsage_hgnnplus_forward.5} parent=0 // pred_check_branch
    %21 = sbr.rel (%p19) target = $region21
  $region20: #{graphsage_hgnnplus_forward.5} parent=0 // pred_region
    %22 = vst [vmem:[#allocation2] sm:$0xff] 0.0
    %23 = vst [vmem:[#allocation2 + $0x8] sm:$0xff] 0.0
    %24 = vst [vmem:[#allocation2 + $0x10] sm:$0xff] 0.0
    %25 = vst [vmem:[#allocation2 + $0x18] sm:$0xff] 0.0
    %26 = vst [vmem:[#allocation2 + $0x20] sm:$0xff] 0.0
    %27 = vst [vmem:[#allocation2 + $0x28] sm:$0xff] 0.0
    %28 = vst [vmem:[#allocation2 + $0x30] sm:$0xff] 0.0
    %29 = vst [vmem:[#allocation2 + $0x38] sm:$0xff] 0.0
    %30 = vst [vmem:[#allocation2 + $0x40] sm:$0xff] 0.0
    %31 = vst [vmem:[#allocation2 + $0x48] sm:$0xff] 0.0
    %32 = vst [vmem:[#allocation2 + $0x50] sm:$0xff] 0.0
    %33 = vst [vmem:[#allocation2 + $0x58] sm:$0xff] 0.0
    %34 = vst [vmem:[#allocation2 + $0x60] sm:$0xff] 0.0
    %35 = vst [vmem:[#allocation2 + $0x68] sm:$0xff] 0.0
    %36 = vst [vmem:[#allocation2 + $0x70] sm:$0xff] 0.0
    %37 = vst [vmem:[#allocation2 + $0x78] sm:$0xff] 0.0
    %38 = vst [vmem:[#allocation2 + $0x80] sm:$0xff] 0.0
    %39 = vst [vmem:[#allocation2 + $0x88] sm:$0xff] 0.0
    %40 = vst [vmem:[#allocation2 + $0x90] sm:$0xff] 0.0
    %41 = vst [vmem:[#allocation2 + $0x98] sm:$0xff] 0.0
    %42 = vst [vmem:[#allocation2 + $0xa0] sm:$0xff] 0.0
    %43 = vst [vmem:[#allocation2 + $0xa8] sm:$0xff] 0.0
    %44 = vst [vmem:[#allocation2 + $0xb0] sm:$0xff] 0.0
    %45 = vst [vmem:[#allocation2 + $0xb8] sm:$0xff] 0.0
    %46 = vst [vmem:[#allocation2 + $0xc0] sm:$0xff] 0.0
    %47 = vst [vmem:[#allocation2 + $0xc8] sm:$0xff] 0.0
    %48 = vst [vmem:[#allocation2 + $0xd0] sm:$0xff] 0.0
    %49 = vst [vmem:[#allocation2 + $0xd8] sm:$0xff] 0.0
    %50 = vst [vmem:[#allocation2 + $0xe0] sm:$0xff] 0.0
    %51 = vst [vmem:[#allocation2 + $0xe8] sm:$0xff] 0.0
    %52 = vst [vmem:[#allocation2 + $0xf0] sm:$0xff] 0.0
    %53 = vst [vmem:[#allocation2 + $0xf8] sm:$0xff] 0.0
  $region21: #{graphsage_hgnnplus_forward.5} parent=0 // pred_fallthru
    _
  %v54 = vld [vmem:[#allocation2] sm:$0xff]
  %v55 = vld [vmem:[#allocation2 + $0x8] sm:$0xff]
  %v56 = vld [vmem:[#allocation2 + $0x10] sm:$0xff]
  %v57 = vld [vmem:[#allocation2 + $0x18] sm:$0xff]
  %v58 = vld [vmem:[#allocation2 + $0x20] sm:$0xff]
  %v59 = vld [vmem:[#allocation2 + $0x28] sm:$0xff]
  %v60 = vld [vmem:[#allocation2 + $0x30] sm:$0xff]
  %v61 = vld [vmem:[#allocation2 + $0x38] sm:$0xff]
  %v62 = vld [vmem:[#allocation2 + $0x40] sm:$0xff]
  %v63 = vld [vmem:[#allocation2 + $0x48] sm:$0xff]
  %v64 = vld [vmem:[#allocation2 + $0x50] sm:$0xff]
  %v65 = vld [vmem:[#allocation2 + $0x58] sm:$0xff]
  %v66 = vld [vmem:[#allocation2 + $0x60] sm:$0xff]
  %v67 = vld [vmem:[#allocation2 + $0x68] sm:$0xff]
  %v68 = vld [vmem:[#allocation2 + $0x70] sm:$0xff]
  %v69 = vld [vmem:[#allocation2 + $0x78] sm:$0xff]
  %v70 = vld [vmem:[#allocation2 + $0x80] sm:$0xff]
  %v71 = vld [vmem:[#allocation2 + $0x88] sm:$0xff]
  %v72 = vld [vmem:[#allocation2 + $0x90] sm:$0xff]
  %v73 = vld [vmem:[#allocation2 + $0x98] sm:$0xff]
  %v74 = vld [vmem:[#allocation2 + $0xa0] sm:$0xff]
  %v75 = vld [vmem:[#allocation2 + $0xa8] sm:$0xff]
  %v76 = vld [vmem:[#allocation2 + $0xb0] sm:$0xff]
  %v77 = vld [vmem:[#allocation2 + $0xb8] sm:$0xff]
  %v78 = vld [vmem:[#allocation2 + $0xc0] sm:$0xff]
  %v79 = vld [vmem:[#allocation2 + $0xc8] sm:$0xff]
  %v80 = vld [vmem:[#allocation2 + $0xd0] sm:$0xff]
  %v81 = vld [vmem:[#allocation2 + $0xd8] sm:$0xff]
  %v82 = vld [vmem:[#allocation2 + $0xe0] sm:$0xff]
  %v83 = vld [vmem:[#allocation2 + $0xe8] sm:$0xff]
  %v84 = vld [vmem:[#allocation2 + $0xf0] sm:$0xff]
  %v85 = vld [vmem:[#allocation2 + $0xf8] sm:$0xff]
  %v86 = vld [vmem:[%s0] sm:$0xf]
  %v87 = vld [vmem:[%s0 + $0x4] sm:$0xf]
  %v88 = vld [vmem:[%s0 + $0x8] sm:$0xf]
  %v89 = vld [vmem:[%s0 + $0xc] sm:$0xf]
  %v90 = vld [vmem:[%s0 + $0x10] sm:$0xf]
  %v91 = vld [vmem:[%s0 + $0x14] sm:$0xf]
  %v92 = vld [vmem:[%s0 + $0x18] sm:$0xf]
  %v93 = vld [vmem:[%s0 + $0x1c] sm:$0xf]
  %v94 = vld [vmem:[%s0 + $0x20] sm:$0xf]
  %v95 = vld [vmem:[%s0 + $0x24] sm:$0xf]
  %v96 = vld [vmem:[%s0 + $0x28] sm:$0xf]
  %v97 = vld [vmem:[%s0 + $0x2c] sm:$0xf]
  %v98 = vld [vmem:[%s0 + $0x30] sm:$0xf]
  %v99 = vld [vmem:[%s0 + $0x34] sm:$0xf]
  %v100 = vld [vmem:[%s0 + $0x38] sm:$0xf]
  %v101 = vld [vmem:[%s0 + $0x3c] sm:$0xf]
  %v102 = vld [vmem:[%s1] sm:$0xff]
  %v103 = vld [vmem:[%s1 + $0x8] sm:$0xff]
  %v104 = vld [vmem:[%s1 + $0x10] sm:$0xff]
  %v105 = vld [vmem:[%s1 + $0x18] sm:$0xff]
  %v106 = vld [vmem:[%s1 + $0x20] sm:$0xff]
  %v107 = vld [vmem:[%s1 + $0x28] sm:$0xff]
  %v108 = vld [vmem:[%s1 + $0x30] sm:$0xff]
  %v109 = vld [vmem:[%s1 + $0x38] sm:$0xff]
  %v110 = vld [vmem:[%s1 + $0x40] sm:$0xff]
  %v111 = vld [vmem:[%s1 + $0x48] sm:$0xff]
  %v112 = vld [vmem:[%s1 + $0x50] sm:$0xff]
  %v113 = vld [vmem:[%s1 + $0x58] sm:$0xff]
  %v114 = vld [vmem:[%s1 + $0x60] sm:$0xff]
  %v115 = vld [vmem:[%s1 + $0x68] sm:$0xff]
  %v116 = vld [vmem:[%s1 + $0x70] sm:$0xff]
  %v117 = vld [vmem:[%s1 + $0x78] sm:$0xff]
  %v134 = vunpack.c.l.b16 %v86
  %v135 = vunpack.c.l.b16 %v87
  %v136 = vunpack.c.l.b16 %v88
  %v137 = vunpack.c.l.b16 %v89
  %v138 = vunpack.c.l.b16 %v90
  %v139 = vunpack.c.l.b16 %v91
  %v140 = vunpack.c.l.b16 %v92
  %v141 = vunpack.c.l.b16 %v93
  %v142 = vunpack.c.l.b16 %v94
  %v143 = vunpack.c.l.b16 %v95
  %v144 = vunpack.c.l.b16 %v96
  %v145 = vunpack.c.l.b16 %v97
  %v146 = vunpack.c.l.b16 %v98
  %v147 = vunpack.c.l.b16 %v99
  %v148 = vunpack.c.l.b16 %v100
  %v149 = vunpack.c.l.b16 %v101
  %v150 = vpack.c.b16 %v135, %v134
  %v151 = vpack.c.b16 %v137, %v136
  %v152 = vpack.c.b16 %v139, %v138
  %v153 = vpack.c.b16 %v141, %v140
  %v154 = vpack.c.b16 %v143, %v142
  %v155 = vpack.c.b16 %v145, %v144
  %v156 = vpack.c.b16 %v147, %v146
  %v157 = vpack.c.b16 %v149, %v148
  %v182 = vunpack.c.l.b16 %v102
  %v183 = vunpack.c.h.b16 %v102
  %v184 = vunpack.c.l.b16 %v103
  %v185 = vunpack.c.h.b16 %v103
  %v186 = vunpack.c.l.b16 %v104
  %v187 = vunpack.c.h.b16 %v104
  %v188 = vunpack.c.l.b16 %v105
  %v189 = vunpack.c.h.b16 %v105
  %v190 = vunpack.c.l.b16 %v106
  %v191 = vunpack.c.h.b16 %v106
  %v192 = vunpack.c.l.b16 %v107
  %v193 = vunpack.c.h.b16 %v107
  %v194 = vunpack.c.l.b16 %v108
  %v195 = vunpack.c.h.b16 %v108
  %v196 = vunpack.c.l.b16 %v109
  %v197 = vunpack.c.h.b16 %v109
  %v198 = vunpack.c.l.b16 %v110
  %v199 = vunpack.c.h.b16 %v110
  %v200 = vunpack.c.l.b16 %v111
  %v201 = vunpack.c.h.b16 %v111
  %v202 = vunpack.c.l.b16 %v112
  %v203 = vunpack.c.h.b16 %v112
  %v204 = vunpack.c.l.b16 %v113
  %v205 = vunpack.c.h.b16 %v113
  %v206 = vunpack.c.l.b16 %v114
  %v207 = vunpack.c.h.b16 %v114
  %v208 = vunpack.c.l.b16 %v115
  %v209 = vunpack.c.h.b16 %v115
  %v210 = vunpack.c.l.b16 %v116
  %v211 = vunpack.c.h.b16 %v116
  %v212 = vunpack.c.l.b16 %v117
  %v213 = vunpack.c.h.b16 %v117
  %v214 = vpack.c.b16 %v184, %v182
  %v215 = vpack.c.b16 %v185, %v183
  %v216 = vpack.c.b16 %v188, %v186
  %v217 = vpack.c.b16 %v189, %v187
  %v218 = vpack.c.b16 %v192, %v190
  %v219 = vpack.c.b16 %v193, %v191
  %v220 = vpack.c.b16 %v196, %v194
  %v221 = vpack.c.b16 %v197, %v195
  %v222 = vpack.c.b16 %v200, %v198
  %v223 = vpack.c.b16 %v201, %v199
  %v224 = vpack.c.b16 %v204, %v202
  %v225 = vpack.c.b16 %v205, %v203
  %v226 = vpack.c.b16 %v208, %v206
  %v227 = vpack.c.b16 %v209, %v207
  %v228 = vpack.c.b16 %v212, %v210
  %v229 = vpack.c.b16 %v213, %v211
  %246 = vmatprep.subr.bf16.mxu0 %v215
  %247 = vmatpush1.bf16.msra.mxu0 %v214
  %248 = vmatprep.subr.bf16.mxu0 %v217
  %249 = vmatpush1.bf16.msra.mxu0 %v216
  %250 = vmatprep.subr.bf16.mxu0 %v219
  %251 = vmatpush1.bf16.msra.mxu0 %v218
  %252 = vmatprep.subr.bf16.mxu0 %v221
  %253 = vmatpush1.bf16.msra.mxu0 %v220
  %254 = vmatprep.subr.bf16.mxu0 %v223
  %255 = vmatpush1.bf16.msra.mxu0 %v222
  %256 = vmatprep.subr.bf16.mxu0 %v225
  %257 = vmatpush1.bf16.msra.mxu0 %v224
  %258 = vmatprep.subr.bf16.mxu0 %v227
  %259 = vmatpush1.bf16.msra.mxu0 %v226
  %260 = vmatprep.subr.bf16.mxu0 %v229
  %261 = vmatpush1.bf16.msra.mxu0 %v228
  %262 = vmatprep.subr.bf16.mxu0 0
  %263 = vmatpush1.bf16.msra.mxu0 0
  %264 = vmatprep.subr.bf16.mxu0 0
  %265 = vmatpush1.bf16.msra.mxu0 0
  %266 = vmatprep.subr.bf16.mxu0 0
  %267 = vmatpush1.bf16.msra.mxu0 0
  %268 = vmatprep.subr.bf16.mxu0 0
  %269 = vmatpush1.bf16.msra.mxu0 0
  %270 = vmatprep.subr.bf16.mxu0 0
  %271 = vmatpush1.bf16.msra.mxu0 0
  %272 = vmatprep.subr.bf16.mxu0 0
  %273 = vmatpush1.bf16.msra.mxu0 0
  %274 = vmatprep.subr.bf16.mxu0 0
  %275 = vmatpush1.bf16.msra.mxu0 0
  %276 = vmatprep.subr.bf16.mxu0 0
  %277 = vmatpush1.bf16.msra.mxu0 0
  %278 = vmatprep.mubr.bf16.mxu0 0
  %279 = vmatmul.mubr.bf16.gmra.mrb[0].mxu0 %v150
  %v280 = vpop.f32.mrb[0].mxu0
  %v281 = vadd.f32 0.0, %v280
  %v282 = vpop.f32.mrb[0].mxu0
  %v283 = vadd.f32 0.0, %v282
  %v284 = vpop.f32.mrb[0].mxu0
  %v285 = vadd.f32 0.0, %v284
  %v286 = vpop.f32.mrb[0].mxu0
  %v287 = vadd.f32 0.0, %v286
  %288 = vmatprep.mubr.bf16.mxu0 0
  %289 = vmatmul.mubr.bf16.gmra.mrb[0].mxu0 %v151
  %v290 = vpop.f32.mrb[0].mxu0
  %v291 = vadd.f32 0.0, %v290
  %v292 = vpop.f32.mrb[0].mxu0
  %v293 = vadd.f32 0.0, %v292
  %v294 = vpop.f32.mrb[0].mxu0
  %v295 = vadd.f32 0.0, %v294
  %v296 = vpop.f32.mrb[0].mxu0
  %v297 = vadd.f32 0.0, %v296
  %298 = vmatprep.mubr.bf16.mxu0 0
  %299 = vmatmul.mubr.bf16.gmra.mrb[0].mxu0 %v152
  %v300 = vpop.f32.mrb[0].mxu0
  %v301 = vadd.f32 0.0, %v300
  %v302 = vpop.f32.mrb[0].mxu0
  %v303 = vadd.f32 0.0, %v302
  %v304 = vpop.f32.mrb[0].mxu0
  %v305 = vadd.f32 0.0, %v304
  %v306 = vpop.f32.mrb[0].mxu0
  %v307 = vadd.f32 0.0, %v306
  %308 = vmatprep.mubr.bf16.mxu0 0
  %309 = vmatmul.mubr.bf16.gmra.mrb[0].mxu0 %v153
  %v310 = vpop.f32.mrb[0].mxu0
  %v311 = vadd.f32 0.0, %v310
  %v312 = vpop.f32.mrb[0].mxu0
  %v313 = vadd.f32 0.0, %v312
  %v314 = vpop.f32.mrb[0].mxu0
  %v315 = vadd.f32 0.0, %v314
  %v316 = vpop.f32.mrb[0].mxu0
  %v317 = vadd.f32 0.0, %v316
  %318 = vmatprep.mubr.bf16.mxu0 0
  %319 = vmatmul.mubr.bf16.gmra.mrb[0].mxu0 %v154
  %v320 = vpop.f32.mrb[0].mxu0
  %v321 = vadd.f32 0.0, %v320
  %v322 = vpop.f32.mrb[0].mxu0
  %v323 = vadd.f32 0.0, %v322
  %v324 = vpop.f32.mrb[0].mxu0
  %v325 = vadd.f32 0.0, %v324
  %v326 = vpop.f32.mrb[0].mxu0
  %v327 = vadd.f32 0.0, %v326
  %328 = vmatprep.mubr.bf16.mxu0 0
  %329 = vmatmul.mubr.bf16.gmra.mrb[0].mxu0 %v155
  %v330 = vpop.f32.mrb[0].mxu0
  %v331 = vadd.f32 0.0, %v330
  %v332 = vpop.f32.mrb[0].mxu0
  %v333 = vadd.f32 0.0, %v332
  %v334 = vpop.f32.mrb[0].mxu0
  %v335 = vadd.f32 0.0, %v334
  %v336 = vpop.f32.mrb[0].mxu0
  %v337 = vadd.f32 0.0, %v336
  %338 = vmatprep.mubr.bf16.mxu0 0
  %339 = vmatmul.mubr.bf16.gmra.mrb[0].mxu0 %v156
  %v340 = vpop.f32.mrb[0].mxu0
  %v341 = vadd.f32 0.0, %v340
  %v342 = vpop.f32.mrb[0].mxu0
  %v343 = vadd.f32 0.0, %v342
  %v344 = vpop.f32.mrb[0].mxu0
  %v345 = vadd.f32 0.0, %v344
  %v346 = vpop.f32.mrb[0].mxu0
  %v347 = vadd.f32 0.0, %v346
  %348 = vmatprep.mubr.bf16.mxu0 0
  %349 = vmatmul.mubr.bf16.gmra.mrb[0].mxu0 %v157
  %v350 = vpop.f32.mrb[0].mxu0
  %v351 = vadd.f32 0.0, %v350
  %v352 = vpop.f32.mrb[0].mxu0
  %v353 = vadd.f32 0.0, %v352
  %v354 = vpop.f32.mrb[0].mxu0
  %v355 = vadd.f32 0.0, %v354
  %v356 = vpop.f32.mrb[0].mxu0
  %v357 = vadd.f32 0.0, %v356
  %358 = vdwg.mxu0
  %v359 = vadd.f32 %v54, %v281
  %v360 = vadd.f32 %v55, %v283
  %v361 = vadd.f32 %v56, %v285
  %v362 = vadd.f32 %v57, %v287
  %v363 = vadd.f32 %v58, %v291
  %v364 = vadd.f32 %v59, %v293
  %v365 = vadd.f32 %v60, %v295
  %v366 = vadd.f32 %v61, %v297
  %v367 = vadd.f32 %v62, %v301
  %v368 = vadd.f32 %v63, %v303
  %v369 = vadd.f32 %v64, %v305
  %v370 = vadd.f32 %v65, %v307
  %v371 = vadd.f32 %v66, %v311
  %v372 = vadd.f32 %v67, %v313
  %v373 = vadd.f32 %v68, %v315
  %v374 = vadd.f32 %v69, %v317
  %v375 = vadd.f32 %v70, %v321
  %v376 = vadd.f32 %v71, %v323
  %v377 = vadd.f32 %v72, %v325
  %v378 = vadd.f32 %v73, %v327
  %v379 = vadd.f32 %v74, %v331
  %v380 = vadd.f32 %v75, %v333
  %v381 = vadd.f32 %v76, %v335
  %v382 = vadd.f32 %v77, %v337
  %v383 = vadd.f32 %v78, %v341
  %v384 = vadd.f32 %v79, %v343
  %v385 = vadd.f32 %v80, %v345
  %v386 = vadd.f32 %v81, %v347
  %v387 = vadd.f32 %v82, %v351
  %v388 = vadd.f32 %v83, %v353
  %v389 = vadd.f32 %v84, %v355
  %v390 = vadd.f32 %v85, %v357
  %391 = vst [vmem:[#allocation2] sm:$0xff] %v359
  %392 = vst [vmem:[#allocation2 + $0x8] sm:$0xff] %v360
  %393 = vst [vmem:[#allocation2 + $0x10] sm:$0xff] %v361
  %394 = vst [vmem:[#allocation2 + $0x18] sm:$0xff] %v362
  %395 = vst [vmem:[#allocation2 + $0x20] sm:$0xff] %v363
  %396 = vst [vmem:[#allocation2 + $0x28] sm:$0xff] %v364
  %397 = vst [vmem:[#allocation2 + $0x30] sm:$0xff] %v365
  %398 = vst [vmem:[#allocation2 + $0x38] sm:$0xff] %v366
  %399 = vst [vmem:[#allocation2 + $0x40] sm:$0xff] %v367
  %400 = vst [vmem:[#allocation2 + $0x48] sm:$0xff] %v368
  %401 = vst [vmem:[#allocation2 + $0x50] sm:$0xff] %v369
  %402 = vst [vmem:[#allocation2 + $0x58] sm:$0xff] %v370
  %403 = vst [vmem:[#allocation2 + $0x60] sm:$0xff] %v371
  %404 = vst [vmem:[#allocation2 + $0x68] sm:$0xff] %v372
  %405 = vst [vmem:[#allocation2 + $0x70] sm:$0xff] %v373
  %406 = vst [vmem:[#allocation2 + $0x78] sm:$0xff] %v374
  %407 = vst [vmem:[#allocation2 + $0x80] sm:$0xff] %v375
  %408 = vst [vmem:[#allocation2 + $0x88] sm:$0xff] %v376
  %409 = vst [vmem:[#allocation2 + $0x90] sm:$0xff] %v377
  %410 = vst [vmem:[#allocation2 + $0x98] sm:$0xff] %v378
  %411 = vst [vmem:[#allocation2 + $0xa0] sm:$0xff] %v379
  %412 = vst [vmem:[#allocation2 + $0xa8] sm:$0xff] %v380
  %413 = vst [vmem:[#allocation2 + $0xb0] sm:$0xff] %v381
  %414 = vst [vmem:[#allocation2 + $0xb8] sm:$0xff] %v382
  %415 = vst [vmem:[#allocation2 + $0xc0] sm:$0xff] %v383
  %416 = vst [vmem:[#allocation2 + $0xc8] sm:$0xff] %v384
  %417 = vst [vmem:[#allocation2 + $0xd0] sm:$0xff] %v385
  %418 = vst [vmem:[#allocation2 + $0xd8] sm:$0xff] %v386
  %419 = vst [vmem:[#allocation2 + $0xe0] sm:$0xff] %v387
  %420 = vst [vmem:[#allocation2 + $0xe8] sm:$0xff] %v388
  %421 = vst [vmem:[#allocation2 + $0xf0] sm:$0xff] %v389
  %422 = vst [vmem:[#allocation2 + $0xf8] sm:$0xff] %v390
  // Predicated region
  $region22: #{graphsage_hgnnplus_forward.5} parent=0 // pred_check
    %p423 = pneg %p18
  $region23: #{graphsage_hgnnplus_forward.5} parent=0 // pred_check_branch
    %425 = sbr.rel (%p423) target = $region25
  $region24: #{graphsage_hgnnplus_forward.5} parent=0 // pred_region
    %v426 = vld [vmem:[#allocation2] sm:$0xff]
    %v427 = vld [vmem:[#allocation2 + $0x8] sm:$0xff]
    %v428 = vld [vmem:[#allocation2 + $0x10] sm:$0xff]
    %v429 = vld [vmem:[#allocation2 + $0x18] sm:$0xff]
    %v430 = vld [vmem:[#allocation2 + $0x20] sm:$0xff]
    %v431 = vld [vmem:[#allocation2 + $0x28] sm:$0xff]
    %v432 = vld [vmem:[#allocation2 + $0x30] sm:$0xff]
    %v433 = vld [vmem:[#allocation2 + $0x38] sm:$0xff]
    %v434 = vld [vmem:[#allocation2 + $0x40] sm:$0xff]
    %v435 = vld [vmem:[#allocation2 + $0x48] sm:$0xff]
    %v436 = vld [vmem:[#allocation2 + $0x50] sm:$0xff]
    %v437 = vld [vmem:[#allocation2 + $0x58] sm:$0xff]
    %v438 = vld [vmem:[#allocation2 + $0x60] sm:$0xff]
    %v439 = vld [vmem:[#allocation2 + $0x68] sm:$0xff]
    %v440 = vld [vmem:[#allocation2 + $0x70] sm:$0xff]
    %v441 = vld [vmem:[#allocation2 + $0x78] sm:$0xff]
    %v442 = vld [vmem:[#allocation2 + $0x80] sm:$0xff]
    %v443 = vld [vmem:[#allocation2 + $0x88] sm:$0xff]
    %v444 = vld [vmem:[#allocation2 + $0x90] sm:$0xff]
    %v445 = vld [vmem:[#allocation2 + $0x98] sm:$0xff]
    %v446 = vld [vmem:[#allocation2 + $0xa0] sm:$0xff]
    %v447 = vld [vmem:[#allocation2 + $0xa8] sm:$0xff]
    %v448 = vld [vmem:[#allocation2 + $0xb0] sm:$0xff]
    %v449 = vld [vmem:[#allocation2 + $0xb8] sm:$0xff]
    %v450 = vld [vmem:[#allocation2 + $0xc0] sm:$0xff]
    %v451 = vld [vmem:[#allocation2 + $0xc8] sm:$0xff]
    %v452 = vld [vmem:[#allocation2 + $0xd0] sm:$0xff]
    %v453 = vld [vmem:[#allocation2 + $0xd8] sm:$0xff]
    %v454 = vld [vmem:[#allocation2 + $0xe0] sm:$0xff]
    %v455 = vld [vmem:[#allocation2 + $0xe8] sm:$0xff]
    %v456 = vld [vmem:[#allocation2 + $0xf0] sm:$0xff]
    %v457 = vld [vmem:[#allocation2 + $0xf8] sm:$0xff]
    %v458 = vpack.c.bf16 %v428, %v426
    %v459 = vpack.c.bf16 %v429, %v427
    %v460 = vpack.c.bf16 %v432, %v430
    %v461 = vpack.c.bf16 %v433, %v431
    %v462 = vpack.c.bf16 %v436, %v434
    %v463 = vpack.c.bf16 %v437, %v435
    %v464 = vpack.c.bf16 %v440, %v438
    %v465 = vpack.c.bf16 %v441, %v439
    %v466 = vpack.c.bf16 %v444, %v442
    %v467 = vpack.c.bf16 %v445, %v443
    %v468 = vpack.c.bf16 %v448, %v446
    %v469 = vpack.c.bf16 %v449, %v447
    %v470 = vpack.c.bf16 %v452, %v450
    %v471 = vpack.c.bf16 %v453, %v451
    %v472 = vpack.c.bf16 %v456, %v454
    %v473 = vpack.c.bf16 %v457, %v455
    %v474 = vld [vmem:[%s2] sm:$0xf]
    %v475 = vld [vmem:[%s2 + $0x4] sm:$0xf]
    %v476 = vld [vmem:[%s2 + $0x8] sm:$0xf]
    %v477 = vld [vmem:[%s2 + $0xc] sm:$0xf]
    %v478 = vld [vmem:[%s2 + $0x10] sm:$0xf]
    %v479 = vld [vmem:[%s2 + $0x14] sm:$0xf]
    %v480 = vld [vmem:[%s2 + $0x18] sm:$0xf]
    %v481 = vld [vmem:[%s2 + $0x1c] sm:$0xf]
    %v482 = vld [vmem:[%s2 + $0x20] sm:$0xf]
    %v483 = vld [vmem:[%s2 + $0x24] sm:$0xf]
    %v484 = vld [vmem:[%s2 + $0x28] sm:$0xf]
    %v485 = vld [vmem:[%s2 + $0x2c] sm:$0xf]
    %v486 = vld [vmem:[%s2 + $0x30] sm:$0xf]
    %v487 = vld [vmem:[%s2 + $0x34] sm:$0xf]
    %v488 = vld [vmem:[%s2 + $0x38] sm:$0xf]
    %v489 = vld [vmem:[%s2 + $0x3c] sm:$0xf]
    %v490 = vld [vmem:[%s2 + $0x40] sm:$0xf]
    %v491 = vld [vmem:[%s2 + $0x44] sm:$0xf]
    %v492 = vld [vmem:[%s2 + $0x48] sm:$0xf]
    %v493 = vld [vmem:[%s2 + $0x4c] sm:$0xf]
    %v494 = vld [vmem:[%s2 + $0x50] sm:$0xf]
    %v495 = vld [vmem:[%s2 + $0x54] sm:$0xf]
    %v496 = vld [vmem:[%s2 + $0x58] sm:$0xf]
    %v497 = vld [vmem:[%s2 + $0x5c] sm:$0xf]
    %v498 = vld [vmem:[%s2 + $0x60] sm:$0xf]
    %v499 = vld [vmem:[%s2 + $0x64] sm:$0xf]
    %v500 = vld [vmem:[%s2 + $0x68] sm:$0xf]
    %v501 = vld [vmem:[%s2 + $0x6c] sm:$0xf]
    %v502 = vld [vmem:[%s2 + $0x70] sm:$0xf]
    %v503 = vld [vmem:[%s2 + $0x74] sm:$0xf]
    %v504 = vld [vmem:[%s2 + $0x78] sm:$0xf]
    %v505 = vld [vmem:[%s2 + $0x7c] sm:$0xf]
    %v506 = vld [vmem:[%s3] sm:$0x1]
    %v508 = vlaneseq
    %v509 = vshrl.u32 %v508, 7
    %v510 = vsub.s32 0, %v509
    %v511 = vrot.slane %v506, %v510
    %v545 = vunpack.c.l.b16 %v474
    %v546 = vunpack.c.l.b16 %v475
    %v547 = vunpack.c.l.b16 %v476
    %v548 = vunpack.c.l.b16 %v477
    %v549 = vunpack.c.l.b16 %v478
    %v550 = vunpack.c.l.b16 %v479
    %v551 = vunpack.c.l.b16 %v480
    %v552 = vunpack.c.l.b16 %v481
    %v553 = vunpack.c.l.b16 %v482
    %v554 = vunpack.c.l.b16 %v483
    %v555 = vunpack.c.l.b16 %v484
    %v556 = vunpack.c.l.b16 %v485
    %v557 = vunpack.c.l.b16 %v486
    %v558 = vunpack.c.l.b16 %v487
    %v559 = vunpack.c.l.b16 %v488
    %v560 = vunpack.c.l.b16 %v489
    %v561 = vunpack.c.l.b16 %v490
    %v562 = vunpack.c.l.b16 %v491
    %v563 = vunpack.c.l.b16 %v492
    %v564 = vunpack.c.l.b16 %v493
    %v565 = vunpack.c.l.b16 %v494
    %v566 = vunpack.c.l.b16 %v495
    %v567 = vunpack.c.l.b16 %v496
    %v568 = vunpack.c.l.b16 %v497
    %v569 = vunpack.c.l.b16 %v498
    %v570 = vunpack.c.l.b16 %v499
    %v571 = vunpack.c.l.b16 %v500
    %v572 = vunpack.c.l.b16 %v501
    %v573 = vunpack.c.l.b16 %v502
    %v574 = vunpack.c.l.b16 %v503
    %v575 = vunpack.c.l.b16 %v504
    %v576 = vunpack.c.l.b16 %v505
    %v577 = vpack.c.b16 %v546, %v545
    %v578 = vpack.c.b16 %v548, %v547
    %v579 = vpack.c.b16 %v550, %v549
    %v580 = vpack.c.b16 %v552, %v551
    %v581 = vpack.c.b16 %v554, %v553
    %v582 = vpack.c.b16 %v556, %v555
    %v583 = vpack.c.b16 %v558, %v557
    %v584 = vpack.c.b16 %v560, %v559
    %v585 = vpack.c.b16 %v562, %v561
    %v586 = vpack.c.b16 %v564, %v563
    %v587 = vpack.c.b16 %v566, %v565
    %v588 = vpack.c.b16 %v568, %v567
    %v589 = vpack.c.b16 %v570, %v569
    %v590 = vpack.c.b16 %v572, %v571
    %v591 = vpack.c.b16 %v574, %v573
    %v592 = vpack.c.b16 %v576, %v575
    %609 = vmatprep.subr.bf16.mxu0 0
    %610 = vmatpush1.bf16.msra.mxu0 %v577
    %611 = vmatprep.subr.bf16.mxu0 0
    %612 = vmatpush1.bf16.msra.mxu0 %v578
    %613 = vmatprep.subr.bf16.mxu0 0
    %614 = vmatpush1.bf16.msra.mxu0 %v579
    %615 = vmatprep.subr.bf16.mxu0 0
    %616 = vmatpush1.bf16.msra.mxu0 %v580
    %617 = vmatprep.subr.bf16.mxu0 0
    %618 = vmatpush1.bf16.msra.mxu0 %v581
    %619 = vmatprep.subr.bf16.mxu0 0
    %620 = vmatpush1.bf16.msra.mxu0 %v582
    %621 = vmatprep.subr.bf16.mxu0 0
    %622 = vmatpush1.bf16.msra.mxu0 %v583
    %623 = vmatprep.subr.bf16.mxu0 0
    %624 = vmatpush1.bf16.msra.mxu0 %v584
    %625 = vmatprep.subr.bf16.mxu0 0
    %626 = vmatpush1.bf16.msra.mxu0 %v585
    %627 = vmatprep.subr.bf16.mxu0 0
    %628 = vmatpush1.bf16.msra.mxu0 %v586
    %629 = vmatprep.subr.bf16.mxu0 0
    %630 = vmatpush1.bf16.msra.mxu0 %v587
    %631 = vmatprep.subr.bf16.mxu0 0
    %632 = vmatpush1.bf16.msra.mxu0 %v588
    %633 = vmatprep.subr.bf16.mxu0 0
    %634 = vmatpush1.bf16.msra.mxu0 %v589
    %635 = vmatprep.subr.bf16.mxu0 0
    %636 = vmatpush1.bf16.msra.mxu0 %v590
    %637 = vmatprep.subr.bf16.mxu0 0
    %638 = vmatpush1.bf16.msra.mxu0 %v591
    %639 = vmatprep.subr.bf16.mxu0 0
    %640 = vmatpush1.bf16.msra.mxu0 %v592
    %641 = vmatprep.mubr.bf16.mxu0 %v459
    %642 = vmatmul.mubr.bf16.gmra.mrb[0].mxu0 %v458
    %v643 = vpop.f32.mrb[0].mxu0
    %v644 = vadd.f32 %v511, %v643
    %v645 = vpop.f32.mrb[0].mxu0
    %v646 = vpop.f32.mrb[0].mxu0
    %v647 = vadd.f32 %v511, %v646
    %v648 = vpop.f32.mrb[0].mxu0
    %649 = vmatprep.mubr.bf16.mxu0 %v461
    %650 = vmatmul.mubr.bf16.gmra.mrb[0].mxu0 %v460
    %v651 = vpop.f32.mrb[0].mxu0
    %v652 = vadd.f32 %v511, %v651
    %v653 = vpop.f32.mrb[0].mxu0
    %v654 = vpop.f32.mrb[0].mxu0
    %v655 = vadd.f32 %v511, %v654
    %v656 = vpop.f32.mrb[0].mxu0
    %657 = vmatprep.mubr.bf16.mxu0 %v463
    %658 = vmatmul.mubr.bf16.gmra.mrb[0].mxu0 %v462
    %v659 = vpop.f32.mrb[0].mxu0
    %v660 = vadd.f32 %v511, %v659
    %v661 = vpop.f32.mrb[0].mxu0
    %v662 = vpop.f32.mrb[0].mxu0
    %v663 = vadd.f32 %v511, %v662
    %v664 = vpop.f32.mrb[0].mxu0
    %665 = vmatprep.mubr.bf16.mxu0 %v465
    %666 = vmatmul.mubr.bf16.gmra.mrb[0].mxu0 %v464
    %v667 = vpop.f32.mrb[0].mxu0
    %v668 = vadd.f32 %v511, %v667
    %v669 = vpop.f32.mrb[0].mxu0
    %v670 = vpop.f32.mrb[0].mxu0
    %v671 = vadd.f32 %v511, %v670
    %v672 = vpop.f32.mrb[0].mxu0
    %673 = vmatprep.mubr.bf16.mxu0 %v467
    %674 = vmatmul.mubr.bf16.gmra.mrb[0].mxu0 %v466
    %v675 = vpop.f32.mrb[0].mxu0
    %v676 = vadd.f32 %v511, %v675
    %v677 = vpop.f32.mrb[0].mxu0
    %v678 = vpop.f32.mrb[0].mxu0
    %v679 = vadd.f32 %v511, %v678
    %v680 = vpop.f32.mrb[0].mxu0
    %681 = vmatprep.mubr.bf16.mxu0 %v469
    %682 = vmatmul.mubr.bf16.gmra.mrb[0].mxu0 %v468
    %v683 = vpop.f32.mrb[0].mxu0
    %v684 = vadd.f32 %v511, %v683
    %v685 = vpop.f32.mrb[0].mxu0
    %v686 = vpop.f32.mrb[0].mxu0
    %v687 = vadd.f32 %v511, %v686
    %v688 = vpop.f32.mrb[0].mxu0
    %689 = vmatprep.mubr.bf16.mxu0 %v471
    %690 = vmatmul.mubr.bf16.gmra.mrb[0].mxu0 %v470
    %v691 = vpop.f32.mrb[0].mxu0
    %v692 = vadd.f32 %v511, %v691
    %v693 = vpop.f32.mrb[0].mxu0
    %v694 = vpop.f32.mrb[0].mxu0
    %v695 = vadd.f32 %v511, %v694
    %v696 = vpop.f32.mrb[0].mxu0
    %697 = vmatprep.mubr.bf16.mxu0 %v473
    %698 = vmatmul.mubr.bf16.gmra.mrb[0].mxu0 %v472
    %v699 = vpop.f32.mrb[0].mxu0
    %v700 = vadd.f32 %v511, %v699
    %v701 = vpop.f32.mrb[0].mxu0
    %v702 = vpop.f32.mrb[0].mxu0
    %v703 = vadd.f32 %v511, %v702
    %v704 = vpop.f32.mrb[0].mxu0
    %705 = vdwg.mxu0
    %v706 = vmax.f32 %v644, 0.0
    %v707 = vmax.f32 %v647, 0.0
    %v708 = vmax.f32 %v652, 0.0
    %v709 = vmax.f32 %v655, 0.0
    %v710 = vmax.f32 %v660, 0.0
    %v711 = vmax.f32 %v663, 0.0
    %v712 = vmax.f32 %v668, 0.0
    %v713 = vmax.f32 %v671, 0.0
    %v714 = vmax.f32 %v676, 0.0
    %v715 = vmax.f32 %v679, 0.0
    %v716 = vmax.f32 %v684, 0.0
    %v717 = vmax.f32 %v687, 0.0
    %v718 = vmax.f32 %v692, 0.0
    %v719 = vmax.f32 %v695, 0.0
    %v720 = vmax.f32 %v700, 0.0
    %v721 = vmax.f32 %v703, 0.0
    %722 = vst [vmem:[%s4] sm:$0xff] %v706
    %723 = vst [vmem:[%s4 + $0x8] sm:$0xff] %v707
    %724 = vst [vmem:[%s4 + $0x10] sm:$0xff] %v708
    %725 = vst [vmem:[%s4 + $0x18] sm:$0xff] %v709
    %726 = vst [vmem:[%s4 + $0x20] sm:$0xff] %v710
    %727 = vst [vmem:[%s4 + $0x28] sm:$0xff] %v711
    %728 = vst [vmem:[%s4 + $0x30] sm:$0xff] %v712
    %729 = vst [vmem:[%s4 + $0x38] sm:$0xff] %v713
    %730 = vst [vmem:[%s4 + $0x40] sm:$0xff] %v714
    %731 = vst [vmem:[%s4 + $0x48] sm:$0xff] %v715
    %732 = vst [vmem:[%s4 + $0x50] sm:$0xff] %v716
    %733 = vst [vmem:[%s4 + $0x58] sm:$0xff] %v717
    %734 = vst [vmem:[%s4 + $0x60] sm:$0xff] %v718
    %735 = vst [vmem:[%s4 + $0x68] sm:$0xff] %v719
    %736 = vst [vmem:[%s4 + $0x70] sm:$0xff] %v720
    %737 = vst [vmem:[%s4 + $0x78] sm:$0xff] %v721
  $region25: #{graphsage_hgnnplus_forward.5} parent=0 // pred_fallthru
    _
  // Predicated region
  $region26: #{graphsage_hgnnplus_forward.5} parent=0 // pred_check
    _
  $region27: #{graphsage_hgnnplus_forward.5} parent=0 // pred_check_branch
    %739 = sbr.rel (0) target = $region29
  $region28: #{graphsage_hgnnplus_forward.5} parent=0 // pred_region
    _
  $region29: #{graphsage_hgnnplus_forward.5} parent=0 // pred_fallthru
    _
  // Predicated region
  $region30: #{graphsage_hgnnplus_forward.5} parent=0 // pred_check
    _
  $region31: #{graphsage_hgnnplus_forward.5} parent=0 // pred_check_branch
    %741 = sbr.rel (0) target = $region33
  $region32: #{graphsage_hgnnplus_forward.5} parent=0 // pred_region
    _
  $region33: #{graphsage_hgnnplus_forward.5} parent=0 // pred_fallthru
    _

</llo_original>
